<compile_context>
chip_gen: v7x
topology: tpu7x:2x2x1
jax: 0.10.0
libtpu: 0.0.40
codegen_flags: <defaults>
</compile_context>

<pallas_src>
import functools
import math

import jax
import jax.numpy as jnp
from jax import lax
from jax.experimental import pallas as pl
from jax.experimental.pallas import tpu as pltpu


_MAX_BLOCK_BATCH = 256   # keeps the per-batch MXU sequence / compile time bounded


def _residue_conv_kernel(x_ref, w_ref, shift_ref, o_ref, *, C, L, K, pad):
    """One grid step processes TB batch elements in PyTorch (N, C, L) layout.

    x_ref    : (TB, C, L)  activations / residual (float32 or bfloat16)
    w_ref    : (C, K*C)    bf16 weights, w[co, k*C + ci] = conv_w[co, ci, k] * bn_scale[co]
    shift_ref: (C, 1)      f32 folded shift = (conv_bias - bn_mean) * bn_scale + bn_beta
    o_ref    : (TB, C, L)  output, same dtype as x
    """
    TB = x_ref.shape[0]

    # Residual kept in exact f32 (x is read exactly once from HBM).
    x32 = x_ref[...].astype(jnp.float32)                       # (TB, C, L)

    # Zero-padded sequence built in registers: channels stay on sublanes, the
    # sequence stays on lanes -> no transposes / relayouts anywhere in-kernel.
    if pad > 0:
        halo = jnp.zeros((TB, C, pad), jnp.float32)
        xpad = jnp.concatenate([halo, x32, halo], axis=2)       # (TB, C, L + 2*pad)
    else:
        xpad = x32

    # im2col along the channel/sublane axis: cols[b, k*C + ci, l] = xpad[b, ci, l + k].
    # Sublane concatenation is a vreg-level stack (no lane shuffle, no reshape).
    cols = jnp.concatenate([xpad[:, :, k:k + L] for k in range(K)], axis=1)
    cols = cols.astype(jnp.bfloat16)                            # (TB, K*C, L)

    # One batched MXU matmul: (TB, C, K*C) x (TB, K*C, L) -> (TB, C, L) with
    # bf16 inputs and f32 accumulation.  Weight broadcast hoisted (once/step).
    w_b = jnp.broadcast_to(w_ref[...][None], (TB, C, K * C))
    acc = lax.dot_general(
        w_b, cols,
        dimension_numbers=(((2,), (1,)), ((0,), (0,))),
        preferred_element_type=jnp.float32)                     # (TB, C, L) f32

    # Folded epilogue: conv bias + BatchNorm1d(eval) collapsed into shift (scale
    # already folded into w), then ReLU.  Dropout(p=0) is the identity.
    # TODO(synk): for dropout p > 0 in training mode, draw a keep-mask with
    # pltpu.prng_seed / pltpu.prng_random_bits and rescale by 1/(1-p).
    y = jnp.maximum(acc + shift_ref[...], 0.0)                  # (TB, C, L) f32

    # Residual add in f32 (exact when x is f32), store in the input dtype.
    o_ref[...] = (x32 + y).astype(o_ref.dtype)


def _fold_params(weight, bias, gamma, beta, running_mean, running_var, eps):
    """Fold BatchNorm1d(eval) + conv bias into (bf16 weight, f32 shift)."""
    C_out, C_in, K = weight.shape
    scale = gamma / jnp.sqrt(running_var + eps)                           # (C,)
    # w2[co, k*C_in + ci] = weight[co, ci, k] * scale[co]
    w2 = jnp.transpose(weight, (0, 2, 1)).reshape(C_out, K * C_in)
    w2 = (w2 * scale[:, None]).astype(jnp.bfloat16)
    shift = ((bias - running_mean) * scale + beta).reshape(C_out, 1)
    return w2, shift.astype(jnp.float32)


def _round_up(n, m):
    return -(-n // m) * m


def _per_step_vmem_bytes(tb, C, L, K, pad, x_itemsize):
    """Rough per-grid-step VMEM footprint (double-buffered I/O + in-kernel temps)."""
    lane = lambda n: _round_up(max(n, 1), 128)
    io = 2 * (tb * C * lane(L) * x_itemsize) * 2                 # x + out blocks, double-buffered
    params = 2 * (C * lane(K * C) * 2 + C * lane(1) * 4)          # weight + shift blocks
    temps = tb * (C * lane(L + 2 * pad) * 4                       # padded f32 activation
                  + K * C * lane(L) * 2                           # bf16 im2col value
                  + C * lane(K * C) * 2                           # broadcast bf16 weight
                  + 2 * C * lane(L) * 4)                          # f32 matmul result + epilogue
    return io + params + temps


def _vmem_capacity_bytes():
    try:
        return int(pltpu.get_tpu_info().vmem_capacity_bytes)
    except Exception:
        return 64 << 20          # conservative fallback: v7x per-TensorCore VMEM


def _choose_block_batch(N, C, L, K, pad, x_itemsize, budget):
    """Largest batch tile that fits the VMEM budget, preferring >= 2 grid steps."""
    tb = 1
    for cand in range(1, min(N, _MAX_BLOCK_BATCH) + 1):
        if _per_step_vmem_bytes(cand, C, L, K, pad, x_itemsize) <= budget:
            tb = cand
        else:
            break
    # Prefer >= 2 grid steps (both v7x TensorCores under "parallel") as long as
    # each step still moves >= ~1 MiB so the ~0.35 us/step overhead stays small.
    if tb >= N and N > 1:
        half = -(-N // 2)
        if 2 * half * C * _round_up(L, 128) * x_itemsize >= (1 << 20):
            tb = half
    return max(tb, 1)


def residue_conv_block(x, weight, bias, gamma, beta, running_mean, running_var,
                       *, padding, eps=1e-5, block_batch=None):
    """ResidueConvBlock forward on PyTorch-layout (N, C, L) input.

    Conv1d('same', stride=1) -> BatchNorm1d(eval stats) -> ReLU -> Dropout(p=0)
    -> + residual, in one fused Pallas kernel.  x may be float32 or bfloat16;
    the output has the same dtype as x.  The conv matmul always uses bf16
    inputs with f32 accumulation; the residual add is exact f32 when x is f32.
    Passing bf16 activations halves HBM traffic (recommended fast path when the
    surrounding model keeps activations in bf16).
    """
    N, C, L = x.shape
    C_out, C_in, K = weight.shape
    assert C_out == C and C_in == C, "ResidueConvBlock keeps embed_dim constant"
    assert 2 * padding == K - 1, "residual add requires a 'same' convolution"

    w2, shift = _fold_params(weight, bias, gamma, beta, running_mean, running_var, eps)

    cap = _vmem_capacity_bytes()
    budget = min(cap // 2, 48 << 20)   # ~32 MiB on v7x (64 MiB VMEM), 48 MiB on v5e/v6e
    if block_batch is None:
        TB = _choose_block_batch(N, C, L, K, padding, x.dtype.itemsize, budget)
    else:
        TB = max(1, min(int(block_batch), N))
    grid = pl.cdiv(N, TB)              # non-divisor TB is fine: last block is partial/masked

    need = _per_step_vmem_bytes(TB, C, L, K, padding, x.dtype.itemsize)
    vmem_limit = int(min(cap - (4 << 20), max(need + (16 << 20), 32 << 20)))

    kernel = functools.partial(_residue_conv_kernel, C=C, L=L, K=K, pad=padding)

    return pl.pallas_call(
        kernel,
        out_shape=jax.ShapeDtypeStruct((N, C, L), x.dtype),
        grid_spec=pltpu.PrefetchScalarGridSpec(
            num_scalar_prefetch=0,
            grid=(grid,),
            in_specs=[
                pl.BlockSpec((TB, C, L), lambda n: (n, 0, 0)),   # x / residual, NCL layout
                pl.BlockSpec((C, K * C), lambda n: (0, 0)),      # folded bf16 weight
                pl.BlockSpec((C, 1), lambda n: (0, 0)),          # folded f32 shift
            ],
            out_specs=pl.BlockSpec((TB, C, L), lambda n: (n, 0, 0)),
        ),
        compiler_params=pltpu.CompilerParams(
            dimension_semantics=("parallel",),
            vmem_limit_bytes=vmem_limit,
        ),
    )(x, w2, shift)


# ------------------------------- references --------------------------------

def _reference_f32(x, weight, bias, gamma, beta, running_mean, running_var,
                   *, padding, eps=1e-5):
    """Plain-JAX f32 reference matching PyTorch Conv1d/BatchNorm1d(eval)/ReLU/+res."""
    xf = x.astype(jnp.float32)
    y = lax.conv_general_dilated(
        xf, weight, window_strides=(1,), padding=[(padding, padding)],
        dimension_numbers=("NCH", "OIH", "NCH"), precision=lax.Precision.HIGHEST)
    y = y + bias[None, :, None]
    scale = gamma / jnp.sqrt(running_var + eps)
    y = y * scale[None, :, None] + (beta - running_mean * scale)[None, :, None]
    return xf + jnp.maximum(y, 0.0)


def _reference_folded_bf16(x, w2_bf16, shift, *, K, padding):
    """f32 emulation of the exact kernel math (bf16 matmul inputs, f32 accumulation)."""
    N, C, L = x.shape
    xf = x.astype(jnp.float32)
    xq = xf.astype(jnp.bfloat16).astype(jnp.float32)
    xpad = jnp.pad(xq, ((0, 0), (0, 0), (padding, padding)))
    cols = jnp.concatenate([xpad[:, :, k:k + L] for k in range(K)], axis=1)  # (N, K*C, L)
    y = jnp.einsum("of,nfl->nol", w2_bf16.astype(jnp.float32), cols,
                   precision=lax.Precision.HIGHEST) + shift
    y = jnp.maximum(y, 0.0)
    return (xf + y).astype(x.dtype)


if __name__ == "__main__":
    # Small shapes consistent with the module's forward pass.
    batch, embed_dim, seq_len = 16, 32, 16
    kernel_size, padding = 3, 1

    key = jax.random.PRNGKey(0)
    k_x, k_w, k_b, k_g, k_be, k_m, k_v = jax.random.split(key, 7)

    x = jax.random.normal(k_x, (batch, embed_dim, seq_len), jnp.float32)

    # Deterministic synthetic parameters (nn.Conv1d / nn.BatchNorm1d shapes).
    fan_in = embed_dim * kernel_size
    bound = 1.0 / math.sqrt(fan_in)
    weight = jax.random.uniform(k_w, (embed_dim, embed_dim, kernel_size),
                                jnp.float32, -bound, bound)
    bias = jax.random.uniform(k_b, (embed_dim,), jnp.float32, -bound, bound)
    gamma = 1.0 + 0.1 * jax.random.normal(k_g, (embed_dim,), jnp.float32)
    beta = 0.1 * jax.random.normal(k_be, (embed_dim,), jnp.float32)
    running_mean = 0.1 * jax.random.normal(k_m, (embed_dim,), jnp.float32)
    running_var = jnp.abs(1.0 + 0.1 * jax.random.normal(k_v, (embed_dim,),
                                                        jnp.float32))

    # f32 activations (exact residual path).
    out = residue_conv_block(x, weight, bias, gamma, beta, running_mean,
                             running_var, padding=padding)
    out = jax.block_until_ready(out)
    assert out.shape == (batch, embed_dim, seq_len) and out.dtype == jnp.float32

    # Tight check against a reference that mirrors the kernel's folded bf16
    # matmul inputs / f32 accumulation exactly.
    w2, shift = _fold_params(weight, bias, gamma, beta, running_mean,
                             running_var, 1e-5)
    ref_exact = _reference_folded_bf16(x, w2, shift, K=kernel_size, padding=padding)
    assert jnp.allclose(out, ref_exact, atol=5e-4, rtol=1e-3), \
        "mismatch vs folded bf16-input reference"

    # Sanity check against the full-f32 module reference (bf16 matmul inputs
    # introduce only a small quantization error).
    ref_f32 = _reference_f32(x, weight, bias, gamma, beta, running_mean,
                             running_var, padding=padding)
    assert float(jnp.max(jnp.abs(out - ref_f32))) < 0.1, \
        "unexpectedly large deviation vs f32 reference"

    # bf16 activation streaming + ragged grid (TB does not divide N) smoke test.
    xb = x[:13].astype(jnp.bfloat16)
    out_b = residue_conv_block(xb, weight, bias, gamma, beta, running_mean,
                               running_var, padding=padding, block_batch=8)
    out_b = jax.block_until_ready(out_b)
    assert out_b.shape == (13, embed_dim, seq_len) and out_b.dtype == jnp.bfloat16
    assert float(jnp.max(jnp.abs(out_b.astype(jnp.float32) - ref_f32[:13]))) < 0.1, \
        "bf16 activation path deviates too much"

    print("KERNEL_OK")
</pallas_src>

<mosaic_0001>
module attributes {stable_mosaic.version = 11 : i64} {
  func.func @_residue_conv_kernel(%arg0: i32, %arg1: memref<16x32x16xf32, #tpu.memory_space<vmem>>, %arg2: memref<32x96xbf16, #tpu.memory_space<vmem>>, %arg3: memref<32x1xf32, #tpu.memory_space<vmem>>, %arg4: memref<16x32x16xf32, #tpu.memory_space<vmem>>) attributes {dimension_semantics = [#tpu.dimension_semantics<parallel>], iteration_bounds = array<i64: 1>, scalar_prefetch = 0 : i64, scratch_operands = 0 : i64, tpu.core_type = #tpu.core_type<tc>, window_params = [{transform_indices = @transform_0, window_bounds = array<i64: 16, 32, 16>}, {pipeline_mode = #tpu.pipeline_mode<synchronous>, transform_indices = @transform_1, window_bounds = array<i64: 32, 96>}, {pipeline_mode = #tpu.pipeline_mode<synchronous>, transform_indices = @transform_2, window_bounds = array<i64: 32, 1>}, {transform_indices = @transform_3, window_bounds = array<i64: 16, 32, 16>}]} {
    %c0 = arith.constant 0 : index
    %c0_0 = arith.constant 0 : index
    %c0_1 = arith.constant 0 : index
    %0 = vector.load %arg1[%c0, %c0_0, %c0_1] : memref<16x32x16xf32, #tpu.memory_space<vmem>>, vector<16x32x16xf32>
    %cst = arith.constant 0.000000e+00 : f32
    %1 = vector.broadcast %cst : f32 to vector<16x32x1xf32>
    %2 = tpu.concatenate %1, %0, %1 in 2 : vector<16x32x1xf32>, vector<16x32x16xf32>, vector<16x32x1xf32> -> vector<16x32x18xf32>
    %3 = vector.extract_strided_slice %2 {offsets = [0, 0, 0], sizes = [16, 32, 16], strides = [1, 1, 1]} : vector<16x32x18xf32> to vector<16x32x16xf32>
    %4 = vector.extract_strided_slice %2 {offsets = [0, 0, 1], sizes = [16, 32, 16], strides = [1, 1, 1]} : vector<16x32x18xf32> to vector<16x32x16xf32>
    %5 = vector.extract_strided_slice %2 {offsets = [0, 0, 2], sizes = [16, 32, 16], strides = [1, 1, 1]} : vector<16x32x18xf32> to vector<16x32x16xf32>
    %6 = tpu.concatenate %3, %4, %5 in 1 : vector<16x32x16xf32>, vector<16x32x16xf32>, vector<16x32x16xf32> -> vector<16x96x16xf32>
    %7 = arith.truncf %6 : vector<16x96x16xf32> to vector<16x96x16xbf16>
    %c0_2 = arith.constant 0 : index
    %c0_3 = arith.constant 0 : index
    %8 = vector.load %arg2[%c0_2, %c0_3] : memref<32x96xbf16, #tpu.memory_space<vmem>>, vector<32x96xbf16>
    %9 = vector.shape_cast %8 : vector<32x96xbf16> to vector<1x32x96xbf16>
    %10 = vector.shape_cast %9 : vector<1x32x96xbf16> to vector<1x32x96xbf16>
    %11 = vector.broadcast %10 : vector<1x32x96xbf16> to vector<16x32x96xbf16>
    %cst_4 = arith.constant dense<0.000000e+00> : vector<16x32x16xf32>
    %12 = tpu.matmul %11, %7, %cst_4 {dimension_numbers = #tpu.dot_dimension_numbers<[2], [1], [1], [2], [0, 0, 0, 1, 1, 2], [0], [0]>} : vector<16x32x96xbf16>, vector<16x96x16xbf16>, vector<16x32x16xf32> -> vector<16x32x16xf32>
    %c0_5 = arith.constant 0 : index
    %c0_6 = arith.constant 0 : index
    %13 = vector.load %arg3[%c0_5, %c0_6] : memref<32x1xf32, #tpu.memory_space<vmem>>, vector<32x1xf32>
    %14 = vector.shape_cast %13 : vector<32x1xf32> to vector<1x32x1xf32>
    %15 = vector.broadcast %14 : vector<1x32x1xf32> to vector<16x32x16xf32>
    %16 = arith.addf %12, %15 : vector<16x32x16xf32>
    %cst_7 = arith.constant 0.000000e+00 : f32
    %17 = vector.broadcast %cst_7 : f32 to vector<16x32x16xf32>
    %18 = arith.maximumf %16, %17 : vector<16x32x16xf32>
    %19 = arith.addf %0, %18 : vector<16x32x16xf32>
    %c0_8 = arith.constant 0 : index
    %c0_9 = arith.constant 0 : index
    %c0_10 = arith.constant 0 : index
    %20 = vector.load %arg4[%c0_8, %c0_9, %c0_10] : memref<16x32x16xf32, #tpu.memory_space<vmem>>, vector<16x32x16xf32>
    tpu.vector_store %arg4[%c0_8, %c0_9, %c0_10], %19 {strides = array<i32>} : memref<16x32x16xf32, #tpu.memory_space<vmem>>, vector<16x32x16xf32>,
    return
  }
  func.func @transform_0(%arg0: i32) -> (i32, i32, i32) {
    %c0_i32 = arith.constant 0 : i32
    %c0_i32_0 = arith.constant 0 : i32
    %c0_i32_1 = arith.constant 0 : i32
    return %arg0, %c0_i32, %c0_i32_0 : i32, i32, i32
  }
  func.func @transform_1(%arg0: i32) -> (i32, i32) {
    %c0_i32 = arith.constant 0 : i32
    %c0_i32_0 = arith.constant 0 : i32
    %c0_i32_1 = arith.constant 0 : i32
    return %c0_i32, %c0_i32_0 : i32, i32
  }
  func.func @transform_2(%arg0: i32) -> (i32, i32) {
    %c0_i32 = arith.constant 0 : i32
    %c0_i32_0 = arith.constant 0 : i32
    %c0_i32_1 = arith.constant 0 : i32
    return %c0_i32, %c0_i32_0 : i32, i32
  }
  func.func @transform_3(%arg0: i32) -> (i32, i32, i32) {
    %c0_i32 = arith.constant 0 : i32
    %c0_i32_0 = arith.constant 0 : i32
    %c0_i32_1 = arith.constant 0 : i32
    return %arg0, %c0_i32, %c0_i32_0 : i32, i32, i32
  }
}

</mosaic_0001>

<llo_original>
// kernel: tpu_custom_call.1
$region0: #{tpu_custom_call.1}
  #allocation0 [shape = 'u32[]', space=smem, size = 0x4, offset = 0x4, fixed_abs, tag = 'smem constant byte address 0x4 - core index']
  #allocation1 [shape = 'u32[144,128]{1,0:T(1,128)}', space=vmem, size = 0x12000, scoped, tag = 'internal scratch']
  %s0 = inlined_call_operand.vmem [shape: f32[16,32,16], index: 0, kind: input, shape index: {}]
  %s1 = inlined_call_operand.vmem [shape: bf16[32,96], index: 1, kind: input, shape index: {}]
  %s2 = inlined_call_operand.vmem [shape: f32[32,1], index: 2, kind: input, shape index: {}]
  %s3 = inlined_call_operand.vmem [shape: f32[16,32,16], index: 3, kind: output, shape index: {}]
  %s4 = sld [smem:[#allocation0]]
  $region22: #{tpu_custom_call.1} parent=0
    _
  %s6 = ssub.s32 1, %s4
  %s7 = scalar_select 0, %s6, %s4
  // Predicated region
  $region2: #{tpu_custom_call.1} parent=0 // pred_check
    _
  $region3: #{tpu_custom_call.1} parent=0 // pred_check_branch
    %9 = sbr.rel (0) target = $region5
  $region4: #{tpu_custom_call.1} parent=0 // pred_region
    _
  $region5: #{tpu_custom_call.1} parent=0 // pred_fallthru
    _
  // Predicated region
  $region6: #{tpu_custom_call.1} parent=0 // pred_check
    _
  $region7: #{tpu_custom_call.1} parent=0 // pred_check_branch
    %11 = sbr.rel (0) target = $region9
  $region8: #{tpu_custom_call.1} parent=0 // pred_region
    _
  $region9: #{tpu_custom_call.1} parent=0 // pred_fallthru
    _
  // Predicated region
  $region10: #{tpu_custom_call.1} parent=0 // pred_check
    _
  $region11: #{tpu_custom_call.1} parent=0 // pred_check_branch
    %13 = sbr.rel (0) target = $region13
  $region12: #{tpu_custom_call.1} parent=0 // pred_region
    _
  $region13: #{tpu_custom_call.1} parent=0 // pred_fallthru
    _
  %v15 = vld [vmem:[%s0] sm:$0xff]
  %v16 = vld [vmem:[%s0 + $0x8] sm:$0xff]
  %v17 = vld [vmem:[%s0 + $0x10] sm:$0xff]
  %v18 = vld [vmem:[%s0 + $0x18] sm:$0xff]
  %v19 = vld [vmem:[%s0 + $0x20] sm:$0xff]
  %v20 = vld [vmem:[%s0 + $0x28] sm:$0xff]
  %v21 = vld [vmem:[%s0 + $0x30] sm:$0xff]
  %v22 = vld [vmem:[%s0 + $0x38] sm:$0xff]
  %v23 = vld [vmem:[%s0 + $0x40] sm:$0xff]
  %v24 = vld [vmem:[%s0 + $0x48] sm:$0xff]
  %v25 = vld [vmem:[%s0 + $0x50] sm:$0xff]
  %v26 = vld [vmem:[%s0 + $0x58] sm:$0xff]
  %v27 = vld [vmem:[%s0 + $0x60] sm:$0xff]
  %v28 = vld [vmem:[%s0 + $0x68] sm:$0xff]
  %v29 = vld [vmem:[%s0 + $0x70] sm:$0xff]
  %v30 = vld [vmem:[%s0 + $0x78] sm:$0xff]
  %v31 = vld [vmem:[%s0 + $0x80] sm:$0xff]
  %v32 = vld [vmem:[%s0 + $0x88] sm:$0xff]
  %v33 = vld [vmem:[%s0 + $0x90] sm:$0xff]
  %v34 = vld [vmem:[%s0 + $0x98] sm:$0xff]
  %v35 = vld [vmem:[%s0 + $0xa0] sm:$0xff]
  %v36 = vld [vmem:[%s0 + $0xa8] sm:$0xff]
  %v37 = vld [vmem:[%s0 + $0xb0] sm:$0xff]
  %v38 = vld [vmem:[%s0 + $0xb8] sm:$0xff]
  %v39 = vld [vmem:[%s0 + $0xc0] sm:$0xff]
  %v40 = vld [vmem:[%s0 + $0xc8] sm:$0xff]
  %v41 = vld [vmem:[%s0 + $0xd0] sm:$0xff]
  %v42 = vld [vmem:[%s0 + $0xd8] sm:$0xff]
  %v43 = vld [vmem:[%s0 + $0xe0] sm:$0xff]
  %v44 = vld [vmem:[%s0 + $0xe8] sm:$0xff]
  %v45 = vld [vmem:[%s0 + $0xf0] sm:$0xff]
  %v46 = vld [vmem:[%s0 + $0xf8] sm:$0xff]
  %v47 = vld [vmem:[%s0 + $0x100] sm:$0xff]
  %v48 = vld [vmem:[%s0 + $0x108] sm:$0xff]
  %v49 = vld [vmem:[%s0 + $0x110] sm:$0xff]
  %v50 = vld [vmem:[%s0 + $0x118] sm:$0xff]
  %v51 = vld [vmem:[%s0 + $0x120] sm:$0xff]
  %v52 = vld [vmem:[%s0 + $0x128] sm:$0xff]
  %v53 = vld [vmem:[%s0 + $0x130] sm:$0xff]
  %v54 = vld [vmem:[%s0 + $0x138] sm:$0xff]
  %v55 = vld [vmem:[%s0 + $0x140] sm:$0xff]
  %v56 = vld [vmem:[%s0 + $0x148] sm:$0xff]
  %v57 = vld [vmem:[%s0 + $0x150] sm:$0xff]
  %v58 = vld [vmem:[%s0 + $0x158] sm:$0xff]
  %v59 = vld [vmem:[%s0 + $0x160] sm:$0xff]
  %v60 = vld [vmem:[%s0 + $0x168] sm:$0xff]
  %v61 = vld [vmem:[%s0 + $0x170] sm:$0xff]
  %v62 = vld [vmem:[%s0 + $0x178] sm:$0xff]
  %v63 = vld [vmem:[%s0 + $0x180] sm:$0xff]
  %v64 = vld [vmem:[%s0 + $0x188] sm:$0xff]
  %v65 = vld [vmem:[%s0 + $0x190] sm:$0xff]
  %v66 = vld [vmem:[%s0 + $0x198] sm:$0xff]
  %v67 = vld [vmem:[%s0 + $0x1a0] sm:$0xff]
  %v68 = vld [vmem:[%s0 + $0x1a8] sm:$0xff]
  %v69 = vld [vmem:[%s0 + $0x1b0] sm:$0xff]
  %v70 = vld [vmem:[%s0 + $0x1b8] sm:$0xff]
  %v71 = vld [vmem:[%s0 + $0x1c0] sm:$0xff]
  %v72 = vld [vmem:[%s0 + $0x1c8] sm:$0xff]
  %v73 = vld [vmem:[%s0 + $0x1d0] sm:$0xff]
  %v74 = vld [vmem:[%s0 + $0x1d8] sm:$0xff]
  %v75 = vld [vmem:[%s0 + $0x1e0] sm:$0xff]
  %v76 = vld [vmem:[%s0 + $0x1e8] sm:$0xff]
  %v77 = vld [vmem:[%s0 + $0x1f0] sm:$0xff]
  %v78 = vld [vmem:[%s0 + $0x1f8] sm:$0xff]
  %143 = vrot.lane.b32.xlu0 %v15, 1
  %v144 = vpop.permute.xlu0 %143
  %145 = vrot.lane.b32.xlu0 %v16, 1
  %v146 = vpop.permute.xlu0 %145
  %147 = vrot.lane.b32.xlu0 %v17, 1
  %v148 = vpop.permute.xlu0 %147
  %149 = vrot.lane.b32.xlu0 %v18, 1
  %v150 = vpop.permute.xlu0 %149
  %151 = vrot.lane.b32.xlu0 %v19, 1
  %v152 = vpop.permute.xlu0 %151
  %153 = vrot.lane.b32.xlu0 %v20, 1
  %v154 = vpop.permute.xlu0 %153
  %155 = vrot.lane.b32.xlu0 %v21, 1
  %v156 = vpop.permute.xlu0 %155
  %157 = vrot.lane.b32.xlu0 %v22, 1
  %v158 = vpop.permute.xlu0 %157
  %159 = vrot.lane.b32.xlu0 %v23, 1
  %v160 = vpop.permute.xlu0 %159
  %161 = vrot.lane.b32.xlu0 %v24, 1
  %v162 = vpop.permute.xlu0 %161
  %163 = vrot.lane.b32.xlu0 %v25, 1
  %v164 = vpop.permute.xlu0 %163
  %165 = vrot.lane.b32.xlu0 %v26, 1
  %v166 = vpop.permute.xlu0 %165
  %167 = vrot.lane.b32.xlu0 %v27, 1
  %v168 = vpop.permute.xlu0 %167
  %169 = vrot.lane.b32.xlu0 %v28, 1
  %v170 = vpop.permute.xlu0 %169
  %171 = vrot.lane.b32.xlu0 %v29, 1
  %v172 = vpop.permute.xlu0 %171
  %173 = vrot.lane.b32.xlu0 %v30, 1
  %v174 = vpop.permute.xlu0 %173
  %175 = vrot.lane.b32.xlu0 %v31, 1
  %v176 = vpop.permute.xlu0 %175
  %177 = vrot.lane.b32.xlu0 %v32, 1
  %v178 = vpop.permute.xlu0 %177
  %179 = vrot.lane.b32.xlu0 %v33, 1
  %v180 = vpop.permute.xlu0 %179
  %181 = vrot.lane.b32.xlu0 %v34, 1
  %v182 = vpop.permute.xlu0 %181
  %183 = vrot.lane.b32.xlu0 %v35, 1
  %v184 = vpop.permute.xlu0 %183
  %185 = vrot.lane.b32.xlu0 %v36, 1
  %v186 = vpop.permute.xlu0 %185
  %187 = vrot.lane.b32.xlu0 %v37, 1
  %v188 = vpop.permute.xlu0 %187
  %189 = vrot.lane.b32.xlu0 %v38, 1
  %v190 = vpop.permute.xlu0 %189
  %191 = vrot.lane.b32.xlu0 %v39, 1
  %v192 = vpop.permute.xlu0 %191
  %193 = vrot.lane.b32.xlu0 %v40, 1
  %v194 = vpop.permute.xlu0 %193
  %195 = vrot.lane.b32.xlu0 %v41, 1
  %v196 = vpop.permute.xlu0 %195
  %197 = vrot.lane.b32.xlu0 %v42, 1
  %v198 = vpop.permute.xlu0 %197
  %199 = vrot.lane.b32.xlu0 %v43, 1
  %v200 = vpop.permute.xlu0 %199
  %201 = vrot.lane.b32.xlu0 %v44, 1
  %v202 = vpop.permute.xlu0 %201
  %203 = vrot.lane.b32.xlu0 %v45, 1
  %v204 = vpop.permute.xlu0 %203
  %205 = vrot.lane.b32.xlu0 %v46, 1
  %v206 = vpop.permute.xlu0 %205
  %207 = vrot.lane.b32.xlu0 %v47, 1
  %v208 = vpop.permute.xlu0 %207
  %209 = vrot.lane.b32.xlu0 %v48, 1
  %v210 = vpop.permute.xlu0 %209
  %211 = vrot.lane.b32.xlu0 %v49, 1
  %v212 = vpop.permute.xlu0 %211
  %213 = vrot.lane.b32.xlu0 %v50, 1
  %v214 = vpop.permute.xlu0 %213
  %215 = vrot.lane.b32.xlu0 %v51, 1
  %v216 = vpop.permute.xlu0 %215
  %217 = vrot.lane.b32.xlu0 %v52, 1
  %v218 = vpop.permute.xlu0 %217
  %219 = vrot.lane.b32.xlu0 %v53, 1
  %v220 = vpop.permute.xlu0 %219
  %221 = vrot.lane.b32.xlu0 %v54, 1
  %v222 = vpop.permute.xlu0 %221
  %223 = vrot.lane.b32.xlu0 %v55, 1
  %v224 = vpop.permute.xlu0 %223
  %225 = vrot.lane.b32.xlu0 %v56, 1
  %v226 = vpop.permute.xlu0 %225
  %227 = vrot.lane.b32.xlu0 %v57, 1
  %v228 = vpop.permute.xlu0 %227
  %229 = vrot.lane.b32.xlu0 %v58, 1
  %v230 = vpop.permute.xlu0 %229
  %231 = vrot.lane.b32.xlu0 %v59, 1
  %v232 = vpop.permute.xlu0 %231
  %233 = vrot.lane.b32.xlu0 %v60, 1
  %v234 = vpop.permute.xlu0 %233
  %235 = vrot.lane.b32.xlu0 %v61, 1
  %v236 = vpop.permute.xlu0 %235
  %237 = vrot.lane.b32.xlu0 %v62, 1
  %v238 = vpop.permute.xlu0 %237
  %239 = vrot.lane.b32.xlu0 %v63, 1
  %v240 = vpop.permute.xlu0 %239
  %241 = vrot.lane.b32.xlu0 %v64, 1
  %v242 = vpop.permute.xlu0 %241
  %243 = vrot.lane.b32.xlu0 %v65, 1
  %v244 = vpop.permute.xlu0 %243
  %245 = vrot.lane.b32.xlu0 %v66, 1
  %v246 = vpop.permute.xlu0 %245
  %247 = vrot.lane.b32.xlu0 %v67, 1
  %v248 = vpop.permute.xlu0 %247
  %249 = vrot.lane.b32.xlu0 %v68, 1
  %v250 = vpop.permute.xlu0 %249
  %251 = vrot.lane.b32.xlu0 %v69, 1
  %v252 = vpop.permute.xlu0 %251
  %253 = vrot.lane.b32.xlu0 %v70, 1
  %v254 = vpop.permute.xlu0 %253
  %255 = vrot.lane.b32.xlu0 %v71, 1
  %v256 = vpop.permute.xlu0 %255
  %257 = vrot.lane.b32.xlu0 %v72, 1
  %v258 = vpop.permute.xlu0 %257
  %259 = vrot.lane.b32.xlu0 %v73, 1
  %v260 = vpop.permute.xlu0 %259
  %261 = vrot.lane.b32.xlu0 %v74, 1
  %v262 = vpop.permute.xlu0 %261
  %263 = vrot.lane.b32.xlu0 %v75, 1
  %v264 = vpop.permute.xlu0 %263
  %265 = vrot.lane.b32.xlu0 %v76, 1
  %v266 = vpop.permute.xlu0 %265
  %267 = vrot.lane.b32.xlu0 %v77, 1
  %v268 = vpop.permute.xlu0 %267
  %269 = vrot.lane.b32.xlu0 %v78, 1
  %v270 = vpop.permute.xlu0 %269
  %vm335 = vcmask 7168
  %v336 = vsel %vm335, 0.0, %v144
  %v337 = vsel %vm335, 0.0, %v146
  %v338 = vsel %vm335, 0.0, %v148
  %v339 = vsel %vm335, 0.0, %v150
  %v340 = vsel %vm335, 0.0, %v152
  %v341 = vsel %vm335, 0.0, %v154
  %v342 = vsel %vm335, 0.0, %v156
  %v343 = vsel %vm335, 0.0, %v158
  %v344 = vsel %vm335, 0.0, %v160
  %v345 = vsel %vm335, 0.0, %v162
  %v346 = vsel %vm335, 0.0, %v164
  %v347 = vsel %vm335, 0.0, %v166
  %v348 = vsel %vm335, 0.0, %v168
  %v349 = vsel %vm335, 0.0, %v170
  %v350 = vsel %vm335, 0.0, %v172
  %v351 = vsel %vm335, 0.0, %v174
  %v352 = vsel %vm335, 0.0, %v176
  %v353 = vsel %vm335, 0.0, %v178
  %v354 = vsel %vm335, 0.0, %v180
  %v355 = vsel %vm335, 0.0, %v182
  %v356 = vsel %vm335, 0.0, %v184
  %v357 = vsel %vm335, 0.0, %v186
  %v358 = vsel %vm335, 0.0, %v188
  %v359 = vsel %vm335, 0.0, %v190
  %v360 = vsel %vm335, 0.0, %v192
  %v361 = vsel %vm335, 0.0, %v194
  %v362 = vsel %vm335, 0.0, %v196
  %v363 = vsel %vm335, 0.0, %v198
  %v364 = vsel %vm335, 0.0, %v200
  %v365 = vsel %vm335, 0.0, %v202
  %v366 = vsel %vm335, 0.0, %v204
  %v367 = vsel %vm335, 0.0, %v206
  %v368 = vsel %vm335, 0.0, %v208
  %v369 = vsel %vm335, 0.0, %v210
  %v370 = vsel %vm335, 0.0, %v212
  %v371 = vsel %vm335, 0.0, %v214
  %v372 = vsel %vm335, 0.0, %v216
  %v373 = vsel %vm335, 0.0, %v218
  %v374 = vsel %vm335, 0.0, %v220
  %v375 = vsel %vm335, 0.0, %v222
  %v376 = vsel %vm335, 0.0, %v224
  %v377 = vsel %vm335, 0.0, %v226
  %v378 = vsel %vm335, 0.0, %v228
  %v379 = vsel %vm335, 0.0, %v230
  %v380 = vsel %vm335, 0.0, %v232
  %v381 = vsel %vm335, 0.0, %v234
  %v382 = vsel %vm335, 0.0, %v236
  %v383 = vsel %vm335, 0.0, %v238
  %v384 = vsel %vm335, 0.0, %v240
  %v385 = vsel %vm335, 0.0, %v242
  %v386 = vsel %vm335, 0.0, %v244
  %v387 = vsel %vm335, 0.0, %v246
  %v388 = vsel %vm335, 0.0, %v248
  %v389 = vsel %vm335, 0.0, %v250
  %v390 = vsel %vm335, 0.0, %v252
  %v391 = vsel %vm335, 0.0, %v254
  %v392 = vsel %vm335, 0.0, %v256
  %v393 = vsel %vm335, 0.0, %v258
  %v394 = vsel %vm335, 0.0, %v260
  %v395 = vsel %vm335, 0.0, %v262
  %v396 = vsel %vm335, 0.0, %v264
  %v397 = vsel %vm335, 0.0, %v266
  %v398 = vsel %vm335, 0.0, %v268
  %v399 = vsel %vm335, 0.0, %v270
  %vm400 = vcmask 138240
  %v401 = vsel %vm400, %v336, 0.0
  %v402 = vsel %vm400, %v337, 0.0
  %v403 = vsel %vm400, %v338, 0.0
  %v404 = vsel %vm400, %v339, 0.0
  %v405 = vsel %vm400, %v340, 0.0
  %v406 = vsel %vm400, %v341, 0.0
  %v407 = vsel %vm400, %v342, 0.0
  %v408 = vsel %vm400, %v343, 0.0
  %v409 = vsel %vm400, %v344, 0.0
  %v410 = vsel %vm400, %v345, 0.0
  %v411 = vsel %vm400, %v346, 0.0
  %v412 = vsel %vm400, %v347, 0.0
  %v413 = vsel %vm400, %v348, 0.0
  %v414 = vsel %vm400, %v349, 0.0
  %v415 = vsel %vm400, %v350, 0.0
  %v416 = vsel %vm400, %v351, 0.0
  %v417 = vsel %vm400, %v352, 0.0
  %v418 = vsel %vm400, %v353, 0.0
  %v419 = vsel %vm400, %v354, 0.0
  %v420 = vsel %vm400, %v355, 0.0
  %v421 = vsel %vm400, %v356, 0.0
  %v422 = vsel %vm400, %v357, 0.0
  %v423 = vsel %vm400, %v358, 0.0
  %v424 = vsel %vm400, %v359, 0.0
  %v425 = vsel %vm400, %v360, 0.0
  %v426 = vsel %vm400, %v361, 0.0
  %v427 = vsel %vm400, %v362, 0.0
  %v428 = vsel %vm400, %v363, 0.0
  %v429 = vsel %vm400, %v364, 0.0
  %v430 = vsel %vm400, %v365, 0.0
  %v431 = vsel %vm400, %v366, 0.0
  %v432 = vsel %vm400, %v367, 0.0
  %v433 = vsel %vm400, %v368, 0.0
  %v434 = vsel %vm400, %v369, 0.0
  %v435 = vsel %vm400, %v370, 0.0
  %v436 = vsel %vm400, %v371, 0.0
  %v437 = vsel %vm400, %v372, 0.0
  %v438 = vsel %vm400, %v373, 0.0
  %v439 = vsel %vm400, %v374, 0.0
  %v440 = vsel %vm400, %v375, 0.0
  %v441 = vsel %vm400, %v376, 0.0
  %v442 = vsel %vm400, %v377, 0.0
  %v443 = vsel %vm400, %v378, 0.0
  %v444 = vsel %vm400, %v379, 0.0
  %v445 = vsel %vm400, %v380, 0.0
  %v446 = vsel %vm400, %v381, 0.0
  %v447 = vsel %vm400, %v382, 0.0
  %v448 = vsel %vm400, %v383, 0.0
  %v449 = vsel %vm400, %v384, 0.0
  %v450 = vsel %vm400, %v385, 0.0
  %v451 = vsel %vm400, %v386, 0.0
  %v452 = vsel %vm400, %v387, 0.0
  %v453 = vsel %vm400, %v388, 0.0
  %v454 = vsel %vm400, %v389, 0.0
  %v455 = vsel %vm400, %v390, 0.0
  %v456 = vsel %vm400, %v391, 0.0
  %v457 = vsel %vm400, %v392, 0.0
  %v458 = vsel %vm400, %v393, 0.0
  %v459 = vsel %vm400, %v394, 0.0
  %v460 = vsel %vm400, %v395, 0.0
  %v461 = vsel %vm400, %v396, 0.0
  %v462 = vsel %vm400, %v397, 0.0
  %v463 = vsel %vm400, %v398, 0.0
  %v464 = vsel %vm400, %v399, 0.0
  %529 = vrot.lane.b32.xlu0 %v401, 127
  %v530 = vpop.permute.xlu0 %529
  %531 = vrot.lane.b32.xlu0 %v402, 127
  %v532 = vpop.permute.xlu0 %531
  %533 = vrot.lane.b32.xlu0 %v403, 127
  %v534 = vpop.permute.xlu0 %533
  %535 = vrot.lane.b32.xlu0 %v404, 127
  %v536 = vpop.permute.xlu0 %535
  %537 = vrot.lane.b32.xlu0 %v405, 127
  %v538 = vpop.permute.xlu0 %537
  %539 = vrot.lane.b32.xlu0 %v406, 127
  %v540 = vpop.permute.xlu0 %539
  %541 = vrot.lane.b32.xlu0 %v407, 127
  %v542 = vpop.permute.xlu0 %541
  %543 = vrot.lane.b32.xlu0 %v408, 127
  %v544 = vpop.permute.xlu0 %543
  %545 = vrot.lane.b32.xlu0 %v409, 127
  %v546 = vpop.permute.xlu0 %545
  %547 = vrot.lane.b32.xlu0 %v410, 127
  %v548 = vpop.permute.xlu0 %547
  %549 = vrot.lane.b32.xlu0 %v411, 127
  %v550 = vpop.permute.xlu0 %549
  %551 = vrot.lane.b32.xlu0 %v412, 127
  %v552 = vpop.permute.xlu0 %551
  %553 = vrot.lane.b32.xlu0 %v413, 127
  %v554 = vpop.permute.xlu0 %553
  %555 = vrot.lane.b32.xlu0 %v414, 127
  %v556 = vpop.permute.xlu0 %555
  %557 = vrot.lane.b32.xlu0 %v415, 127
  %v558 = vpop.permute.xlu0 %557
  %559 = vrot.lane.b32.xlu0 %v416, 127
  %v560 = vpop.permute.xlu0 %559
  %561 = vrot.lane.b32.xlu0 %v417, 127
  %v562 = vpop.permute.xlu0 %561
  %563 = vrot.lane.b32.xlu0 %v418, 127
  %v564 = vpop.permute.xlu0 %563
  %565 = vrot.lane.b32.xlu0 %v419, 127
  %v566 = vpop.permute.xlu0 %565
  %567 = vrot.lane.b32.xlu0 %v420, 127
  %v568 = vpop.permute.xlu0 %567
  %569 = vrot.lane.b32.xlu0 %v421, 127
  %v570 = vpop.permute.xlu0 %569
  %571 = vrot.lane.b32.xlu0 %v422, 127
  %v572 = vpop.permute.xlu0 %571
  %573 = vrot.lane.b32.xlu0 %v423, 127
  %v574 = vpop.permute.xlu0 %573
  %575 = vrot.lane.b32.xlu0 %v424, 127
  %v576 = vpop.permute.xlu0 %575
  %577 = vrot.lane.b32.xlu0 %v425, 127
  %v578 = vpop.permute.xlu0 %577
  %579 = vrot.lane.b32.xlu0 %v426, 127
  %v580 = vpop.permute.xlu0 %579
  %581 = vrot.lane.b32.xlu0 %v427, 127
  %v582 = vpop.permute.xlu0 %581
  %583 = vrot.lane.b32.xlu0 %v428, 127
  %v584 = vpop.permute.xlu0 %583
  %585 = vrot.lane.b32.xlu0 %v429, 127
  %v586 = vpop.permute.xlu0 %585
  %587 = vrot.lane.b32.xlu0 %v430, 127
  %v588 = vpop.permute.xlu0 %587
  %589 = vrot.lane.b32.xlu0 %v431, 127
  %v590 = vpop.permute.xlu0 %589
  %591 = vrot.lane.b32.xlu0 %v432, 127
  %v592 = vpop.permute.xlu0 %591
  %593 = vrot.lane.b32.xlu0 %v433, 127
  %v594 = vpop.permute.xlu0 %593
  %595 = vrot.lane.b32.xlu0 %v434, 127
  %v596 = vpop.permute.xlu0 %595
  %597 = vrot.lane.b32.xlu0 %v435, 127
  %v598 = vpop.permute.xlu0 %597
  %599 = vrot.lane.b32.xlu0 %v436, 127
  %v600 = vpop.permute.xlu0 %599
  %601 = vrot.lane.b32.xlu0 %v437, 127
  %v602 = vpop.permute.xlu0 %601
  %603 = vrot.lane.b32.xlu0 %v438, 127
  %v604 = vpop.permute.xlu0 %603
  %605 = vrot.lane.b32.xlu0 %v439, 127
  %v606 = vpop.permute.xlu0 %605
  %607 = vrot.lane.b32.xlu0 %v440, 127
  %v608 = vpop.permute.xlu0 %607
  %609 = vrot.lane.b32.xlu0 %v441, 127
  %v610 = vpop.permute.xlu0 %609
  %611 = vrot.lane.b32.xlu0 %v442, 127
  %v612 = vpop.permute.xlu0 %611
  %613 = vrot.lane.b32.xlu0 %v443, 127
  %v614 = vpop.permute.xlu0 %613
  %615 = vrot.lane.b32.xlu0 %v444, 127
  %v616 = vpop.permute.xlu0 %615
  %617 = vrot.lane.b32.xlu0 %v445, 127
  %v618 = vpop.permute.xlu0 %617
  %619 = vrot.lane.b32.xlu0 %v446, 127
  %v620 = vpop.permute.xlu0 %619
  %621 = vrot.lane.b32.xlu0 %v447, 127
  %v622 = vpop.permute.xlu0 %621
  %623 = vrot.lane.b32.xlu0 %v448, 127
  %v624 = vpop.permute.xlu0 %623
  %625 = vrot.lane.b32.xlu0 %v449, 127
  %v626 = vpop.permute.xlu0 %625
  %627 = vrot.lane.b32.xlu0 %v450, 127
  %v628 = vpop.permute.xlu0 %627
  %629 = vrot.lane.b32.xlu0 %v451, 127
  %v630 = vpop.permute.xlu0 %629
  %631 = vrot.lane.b32.xlu0 %v452, 127
  %v632 = vpop.permute.xlu0 %631
  %633 = vrot.lane.b32.xlu0 %v453, 127
  %v634 = vpop.permute.xlu0 %633
  %635 = vrot.lane.b32.xlu0 %v454, 127
  %v636 = vpop.permute.xlu0 %635
  %637 = vrot.lane.b32.xlu0 %v455, 127
  %v638 = vpop.permute.xlu0 %637
  %639 = vrot.lane.b32.xlu0 %v456, 127
  %v640 = vpop.permute.xlu0 %639
  %641 = vrot.lane.b32.xlu0 %v457, 127
  %v642 = vpop.permute.xlu0 %641
  %643 = vrot.lane.b32.xlu0 %v458, 127
  %v644 = vpop.permute.xlu0 %643
  %645 = vrot.lane.b32.xlu0 %v459, 127
  %v646 = vpop.permute.xlu0 %645
  %647 = vrot.lane.b32.xlu0 %v460, 127
  %v648 = vpop.permute.xlu0 %647
  %649 = vrot.lane.b32.xlu0 %v461, 127
  %v650 = vpop.permute.xlu0 %649
  %651 = vrot.lane.b32.xlu0 %v462, 127
  %v652 = vpop.permute.xlu0 %651
  %653 = vrot.lane.b32.xlu0 %v463, 127
  %v654 = vpop.permute.xlu0 %653
  %655 = vrot.lane.b32.xlu0 %v464, 127
  %v656 = vpop.permute.xlu0 %655
  %721 = vrot.lane.b32.xlu0 %v401, 126
  %v722 = vpop.permute.xlu0 %721
  %723 = vrot.lane.b32.xlu0 %v402, 126
  %v724 = vpop.permute.xlu0 %723
  %725 = vrot.lane.b32.xlu0 %v403, 126
  %v726 = vpop.permute.xlu0 %725
  %727 = vrot.lane.b32.xlu0 %v404, 126
  %v728 = vpop.permute.xlu0 %727
  %729 = vrot.lane.b32.xlu0 %v405, 126
  %v730 = vpop.permute.xlu0 %729
  %731 = vrot.lane.b32.xlu0 %v406, 126
  %v732 = vpop.permute.xlu0 %731
  %733 = vrot.lane.b32.xlu0 %v407, 126
  %v734 = vpop.permute.xlu0 %733
  %735 = vrot.lane.b32.xlu0 %v408, 126
  %v736 = vpop.permute.xlu0 %735
  %737 = vrot.lane.b32.xlu0 %v409, 126
  %v738 = vpop.permute.xlu0 %737
  %739 = vrot.lane.b32.xlu0 %v410, 126
  %v740 = vpop.permute.xlu0 %739
  %741 = vrot.lane.b32.xlu0 %v411, 126
  %v742 = vpop.permute.xlu0 %741
  %743 = vrot.lane.b32.xlu0 %v412, 126
  %v744 = vpop.permute.xlu0 %743
  %745 = vrot.lane.b32.xlu0 %v413, 126
  %v746 = vpop.permute.xlu0 %745
  %747 = vrot.lane.b32.xlu0 %v414, 126
  %v748 = vpop.permute.xlu0 %747
  %749 = vrot.lane.b32.xlu0 %v415, 126
  %v750 = vpop.permute.xlu0 %749
  %751 = vrot.lane.b32.xlu0 %v416, 126
  %v752 = vpop.permute.xlu0 %751
  %753 = vrot.lane.b32.xlu0 %v417, 126
  %v754 = vpop.permute.xlu0 %753
  %755 = vrot.lane.b32.xlu0 %v418, 126
  %v756 = vpop.permute.xlu0 %755
  %757 = vrot.lane.b32.xlu0 %v419, 126
  %v758 = vpop.permute.xlu0 %757
  %759 = vrot.lane.b32.xlu0 %v420, 126
  %v760 = vpop.permute.xlu0 %759
  %761 = vrot.lane.b32.xlu0 %v421, 126
  %v762 = vpop.permute.xlu0 %761
  %763 = vrot.lane.b32.xlu0 %v422, 126
  %v764 = vpop.permute.xlu0 %763
  %765 = vrot.lane.b32.xlu0 %v423, 126
  %v766 = vpop.permute.xlu0 %765
  %767 = vrot.lane.b32.xlu0 %v424, 126
  %v768 = vpop.permute.xlu0 %767
  %769 = vrot.lane.b32.xlu0 %v425, 126
  %v770 = vpop.permute.xlu0 %769
  %771 = vrot.lane.b32.xlu0 %v426, 126
  %v772 = vpop.permute.xlu0 %771
  %773 = vrot.lane.b32.xlu0 %v427, 126
  %v774 = vpop.permute.xlu0 %773
  %775 = vrot.lane.b32.xlu0 %v428, 126
  %v776 = vpop.permute.xlu0 %775
  %777 = vrot.lane.b32.xlu0 %v429, 126
  %v778 = vpop.permute.xlu0 %777
  %779 = vrot.lane.b32.xlu0 %v430, 126
  %v780 = vpop.permute.xlu0 %779
  %781 = vrot.lane.b32.xlu0 %v431, 126
  %v782 = vpop.permute.xlu0 %781
  %783 = vrot.lane.b32.xlu0 %v432, 126
  %v784 = vpop.permute.xlu0 %783
  %785 = vrot.lane.b32.xlu0 %v433, 126
  %v786 = vpop.permute.xlu0 %785
  %787 = vrot.lane.b32.xlu0 %v434, 126
  %v788 = vpop.permute.xlu0 %787
  %789 = vrot.lane.b32.xlu0 %v435, 126
  %v790 = vpop.permute.xlu0 %789
  %791 = vrot.lane.b32.xlu0 %v436, 126
  %v792 = vpop.permute.xlu0 %791
  %793 = vrot.lane.b32.xlu0 %v437, 126
  %v794 = vpop.permute.xlu0 %793
  %795 = vrot.lane.b32.xlu0 %v438, 126
  %v796 = vpop.permute.xlu0 %795
  %797 = vrot.lane.b32.xlu0 %v439, 126
  %v798 = vpop.permute.xlu0 %797
  %799 = vrot.lane.b32.xlu0 %v440, 126
  %v800 = vpop.permute.xlu0 %799
  %801 = vrot.lane.b32.xlu0 %v441, 126
  %v802 = vpop.permute.xlu0 %801
  %803 = vrot.lane.b32.xlu0 %v442, 126
  %v804 = vpop.permute.xlu0 %803
  %805 = vrot.lane.b32.xlu0 %v443, 126
  %v806 = vpop.permute.xlu0 %805
  %807 = vrot.lane.b32.xlu0 %v444, 126
  %v808 = vpop.permute.xlu0 %807
  %809 = vrot.lane.b32.xlu0 %v445, 126
  %v810 = vpop.permute.xlu0 %809
  %811 = vrot.lane.b32.xlu0 %v446, 126
  %v812 = vpop.permute.xlu0 %811
  %813 = vrot.lane.b32.xlu0 %v447, 126
  %v814 = vpop.permute.xlu0 %813
  %815 = vrot.lane.b32.xlu0 %v448, 126
  %v816 = vpop.permute.xlu0 %815
  %817 = vrot.lane.b32.xlu0 %v449, 126
  %v818 = vpop.permute.xlu0 %817
  %819 = vrot.lane.b32.xlu0 %v450, 126
  %v820 = vpop.permute.xlu0 %819
  %821 = vrot.lane.b32.xlu0 %v451, 126
  %v822 = vpop.permute.xlu0 %821
  %823 = vrot.lane.b32.xlu0 %v452, 126
  %v824 = vpop.permute.xlu0 %823
  %825 = vrot.lane.b32.xlu0 %v453, 126
  %v826 = vpop.permute.xlu0 %825
  %827 = vrot.lane.b32.xlu0 %v454, 126
  %v828 = vpop.permute.xlu0 %827
  %829 = vrot.lane.b32.xlu0 %v455, 126
  %v830 = vpop.permute.xlu0 %829
  %831 = vrot.lane.b32.xlu0 %v456, 126
  %v832 = vpop.permute.xlu0 %831
  %833 = vrot.lane.b32.xlu0 %v457, 126
  %v834 = vpop.permute.xlu0 %833
  %835 = vrot.lane.b32.xlu0 %v458, 126
  %v836 = vpop.permute.xlu0 %835
  %837 = vrot.lane.b32.xlu0 %v459, 126
  %v838 = vpop.permute.xlu0 %837
  %839 = vrot.lane.b32.xlu0 %v460, 126
  %v840 = vpop.permute.xlu0 %839
  %841 = vrot.lane.b32.xlu0 %v461, 126
  %v842 = vpop.permute.xlu0 %841
  %843 = vrot.lane.b32.xlu0 %v462, 126
  %v844 = vpop.permute.xlu0 %843
  %845 = vrot.lane.b32.xlu0 %v463, 126
  %v846 = vpop.permute.xlu0 %845
  %847 = vrot.lane.b32.xlu0 %v464, 126
  %v848 = vpop.permute.xlu0 %847
  %v913 = vpack.c.bf16 %v402, %v401
  %v914 = vpack.c.bf16 %v404, %v403
  %v915 = vpack.c.bf16 %v532, %v530
  %v916 = vpack.c.bf16 %v536, %v534
  %v917 = vpack.c.bf16 %v724, %v722
  %v918 = vpack.c.bf16 %v728, %v726
  %v919 = vpack.c.bf16 %v406, %v405
  %v920 = vpack.c.bf16 %v408, %v407
  %v921 = vpack.c.bf16 %v540, %v538
  %v922 = vpack.c.bf16 %v544, %v542
  %v923 = vpack.c.bf16 %v732, %v730
  %v924 = vpack.c.bf16 %v736, %v734
  %v925 = vpack.c.bf16 %v410, %v409
  %v926 = vpack.c.bf16 %v412, %v411
  %v927 = vpack.c.bf16 %v548, %v546
  %v928 = vpack.c.bf16 %v552, %v550
  %v929 = vpack.c.bf16 %v740, %v738
  %v930 = vpack.c.bf16 %v744, %v742
  %v931 = vpack.c.bf16 %v414, %v413
  %v932 = vpack.c.bf16 %v416, %v415
  %v933 = vpack.c.bf16 %v556, %v554
  %v934 = vpack.c.bf16 %v560, %v558
  %v935 = vpack.c.bf16 %v748, %v746
  %v936 = vpack.c.bf16 %v752, %v750
  %v937 = vpack.c.bf16 %v418, %v417
  %v938 = vpack.c.bf16 %v420, %v419
  %v939 = vpack.c.bf16 %v564, %v562
  %v940 = vpack.c.bf16 %v568, %v566
  %v941 = vpack.c.bf16 %v756, %v754
  %v942 = vpack.c.bf16 %v760, %v758
  %v943 = vpack.c.bf16 %v422, %v421
  %v944 = vpack.c.bf16 %v424, %v423
  %v945 = vpack.c.bf16 %v572, %v570
  %v946 = vpack.c.bf16 %v576, %v574
  %v947 = vpack.c.bf16 %v764, %v762
  %v948 = vpack.c.bf16 %v768, %v766
  %v949 = vpack.c.bf16 %v426, %v425
  %v950 = vpack.c.bf16 %v428, %v427
  %v951 = vpack.c.bf16 %v580, %v578
  %v952 = vpack.c.bf16 %v584, %v582
  %v953 = vpack.c.bf16 %v772, %v770
  %v954 = vpack.c.bf16 %v776, %v774
  %v955 = vpack.c.bf16 %v430, %v429
  %v956 = vpack.c.bf16 %v432, %v431
  %v957 = vpack.c.bf16 %v588, %v586
  %v958 = vpack.c.bf16 %v592, %v590
  %v959 = vpack.c.bf16 %v780, %v778
  %v960 = vpack.c.bf16 %v784, %v782
  %v961 = vpack.c.bf16 %v434, %v433
  %v962 = vpack.c.bf16 %v436, %v435
  %v963 = vpack.c.bf16 %v596, %v594
  %v964 = vpack.c.bf16 %v600, %v598
  %v965 = vpack.c.bf16 %v788, %v786
  %v966 = vpack.c.bf16 %v792, %v790
  %v967 = vpack.c.bf16 %v438, %v437
  %v968 = vpack.c.bf16 %v440, %v439
  %v969 = vpack.c.bf16 %v604, %v602
  %v970 = vpack.c.bf16 %v608, %v606
  %v971 = vpack.c.bf16 %v796, %v794
  %v972 = vpack.c.bf16 %v800, %v798
  %v973 = vpack.c.bf16 %v442, %v441
  %v974 = vpack.c.bf16 %v444, %v443
  %v975 = vpack.c.bf16 %v612, %v610
  %v976 = vpack.c.bf16 %v616, %v614
  %v977 = vpack.c.bf16 %v804, %v802
  %v978 = vpack.c.bf16 %v808, %v806
  %v979 = vpack.c.bf16 %v446, %v445
  %v980 = vpack.c.bf16 %v448, %v447
  %v981 = vpack.c.bf16 %v620, %v618
  %v982 = vpack.c.bf16 %v624, %v622
  %v983 = vpack.c.bf16 %v812, %v810
  %v984 = vpack.c.bf16 %v816, %v814
  %v985 = vpack.c.bf16 %v450, %v449
  %v986 = vpack.c.bf16 %v452, %v451
  %v987 = vpack.c.bf16 %v628, %v626
  %v988 = vpack.c.bf16 %v632, %v630
  %v989 = vpack.c.bf16 %v820, %v818
  %v990 = vpack.c.bf16 %v824, %v822
  %v991 = vpack.c.bf16 %v454, %v453
  %v992 = vpack.c.bf16 %v456, %v455
  %v993 = vpack.c.bf16 %v636, %v634
  %v994 = vpack.c.bf16 %v640, %v638
  %v995 = vpack.c.bf16 %v828, %v826
  %v996 = vpack.c.bf16 %v832, %v830
  %v997 = vpack.c.bf16 %v458, %v457
  %v998 = vpack.c.bf16 %v460, %v459
  %v999 = vpack.c.bf16 %v644, %v642
  %v1000 = vpack.c.bf16 %v648, %v646
  %v1001 = vpack.c.bf16 %v836, %v834
  %v1002 = vpack.c.bf16 %v840, %v838
  %v1003 = vpack.c.bf16 %v462, %v461
  %v1004 = vpack.c.bf16 %v464, %v463
  %v1005 = vpack.c.bf16 %v652, %v650
  %v1006 = vpack.c.bf16 %v656, %v654
  %v1007 = vpack.c.bf16 %v844, %v842
  %v1008 = vpack.c.bf16 %v848, %v846
  %v1009 = vld [vmem:[%s1] sm:$0xf]
  %v1010 = vld [vmem:[%s1 + $0x4] sm:$0xf]
  %v1011 = vld [vmem:[%s1 + $0x8] sm:$0xf]
  %v1012 = vld [vmem:[%s1 + $0xc] sm:$0xf]
  %v1013 = vld [vmem:[%s2] sm:$0xff]
  %v1014 = vld [vmem:[%s2 + $0x8] sm:$0xff]
  %v1015 = vld [vmem:[%s2 + $0x10] sm:$0xff]
  %v1016 = vld [vmem:[%s2 + $0x18] sm:$0xff]
  %1018 = vset.pattern.permute.xlu0 0
  %1019 = vperm.xlu0 %1018, %v1013
  %v1020 = vpop.permute.xlu0 %1019
  %1023 = vset.pattern.permute.xlu0 0
  %1024 = vperm.xlu0 %1023, %v1014
  %v1025 = vpop.permute.xlu0 %1024
  %1028 = vset.pattern.permute.xlu0 0
  %1029 = vperm.xlu0 %1028, %v1015
  %v1030 = vpop.permute.xlu0 %1029
  %1033 = vset.pattern.permute.xlu0 0
  %1034 = vperm.xlu0 %1033, %v1016
  %v1035 = vpop.permute.xlu0 %1034
  %v1041 = vunpack.c.l.b16 %v1009
  %v1042 = vunpack.c.l.b16 %v1010
  %v1043 = vunpack.c.l.b16 %v1011
  %v1044 = vunpack.c.l.b16 %v1012
  %v1045 = vpack.c.b16 %v1042, %v1041
  %v1046 = vpack.c.b16 %v1044, %v1043
  %vm1047 = vcmask 785408
  %v1049 = vsel %vm1047, %v1045, 0
  %v1052 = vsel %vm1047, %v1046, 0
  %1054 = vmatprep.subr.bf16.mxu0 0
  %1055 = vmatpush1.bf16.msra.mxu0 %v913
  %1056 = vmatprep.subr.bf16.mxu0 0
  %1057 = vmatpush1.bf16.msra.mxu0 %v914
  %1058 = vmatprep.subr.bf16.mxu0 0
  %1059 = vmatpush1.bf16.msra.mxu0 %v915
  %1060 = vmatprep.subr.bf16.mxu0 0
  %1061 = vmatpush1.bf16.msra.mxu0 %v916
  %1062 = vmatprep.subr.bf16.mxu0 0
  %1063 = vmatpush1.bf16.msra.mxu0 %v917
  %1064 = vmatprep.subr.bf16.mxu0 0
  %1065 = vmatpush1.bf16.msra.mxu0 %v918
  %1066 = vmatprep.subr.bf16.mxu0 0
  %1067 = vmatpush1.bf16.msra.mxu0 0
  %1068 = vmatprep.subr.bf16.mxu0 0
  %1069 = vmatpush1.bf16.msra.mxu0 0
  %1070 = vmatprep.subr.bf16.mxu0 0
  %1071 = vmatpush1.bf16.msra.mxu0 0
  %1072 = vmatprep.subr.bf16.mxu0 0
  %1073 = vmatpush1.bf16.msra.mxu0 0
  %1074 = vmatprep.subr.bf16.mxu0 0
  %1075 = vmatpush1.bf16.msra.mxu0 0
  %1076 = vmatprep.subr.bf16.mxu0 0
  %1077 = vmatpush1.bf16.msra.mxu0 0
  %1078 = vmatprep.subr.bf16.mxu0 0
  %1079 = vmatpush1.bf16.msra.mxu0 0
  %1080 = vmatprep.subr.bf16.mxu0 0
  %1081 = vmatpush1.bf16.msra.mxu0 0
  %1082 = vmatprep.subr.bf16.mxu0 0
  %1083 = vmatpush1.bf16.msra.mxu0 0
  %1084 = vmatprep.subr.bf16.mxu0 0
  %1085 = vmatpush1.bf16.msra.mxu0 0
  %1086 = vmatprep.mubr.bf16.mxu0 0
  %1087 = vmatmul.mubr.bf16.gmra.mrb[0].mxu0 %v1049
  %v1088 = vpop.f32.mrb[0].mxu0
  %v1089 = vadd.f32 %v1020, %v1088
  %v1090 = vpop.f32.mrb[0].mxu0
  %v1091 = vpop.f32.mrb[0].mxu0
  %v1092 = vadd.f32 %v1025, %v1091
  %v1093 = vpop.f32.mrb[0].mxu0
  %1094 = vmatprep.mubr.bf16.mxu0 0
  %1095 = vmatmul.mubr.bf16.gmra.mrb[0].mxu0 %v1052
  %v1096 = vpop.f32.mrb[0].mxu0
  %v1097 = vadd.f32 %v1030, %v1096
  %v1098 = vpop.f32.mrb[0].mxu0
  %v1099 = vpop.f32.mrb[0].mxu0
  %v1100 = vadd.f32 %v1035, %v1099
  %v1101 = vpop.f32.mrb[0].mxu0
  %1102 = vdwg.mxu0
  %1103 = vmatprep.subr.bf16.mxu0 0
  %1104 = vmatpush1.bf16.msra.mxu0 %v919
  %1105 = vmatprep.subr.bf16.mxu0 0
  %1106 = vmatpush1.bf16.msra.mxu0 %v920
  %1107 = vmatprep.subr.bf16.mxu0 0
  %1108 = vmatpush1.bf16.msra.mxu0 %v921
  %1109 = vmatprep.subr.bf16.mxu0 0
  %1110 = vmatpush1.bf16.msra.mxu0 %v922
  %1111 = vmatprep.subr.bf16.mxu0 0
  %1112 = vmatpush1.bf16.msra.mxu0 %v923
  %1113 = vmatprep.subr.bf16.mxu0 0
  %1114 = vmatpush1.bf16.msra.mxu0 %v924
  %1115 = vmatprep.subr.bf16.mxu0 0
  %1116 = vmatpush1.bf16.msra.mxu0 0
  %1117 = vmatprep.subr.bf16.mxu0 0
  %1118 = vmatpush1.bf16.msra.mxu0 0
  %1119 = vmatprep.subr.bf16.mxu0 0
  %1120 = vmatpush1.bf16.msra.mxu0 0
  %1121 = vmatprep.subr.bf16.mxu0 0
  %1122 = vmatpush1.bf16.msra.mxu0 0
  %1123 = vmatprep.subr.bf16.mxu0 0
  %1124 = vmatpush1.bf16.msra.mxu0 0
  %1125 = vmatprep.subr.bf16.mxu0 0
  %1126 = vmatpush1.bf16.msra.mxu0 0
  %1127 = vmatprep.subr.bf16.mxu0 0
  %1128 = vmatpush1.bf16.msra.mxu0 0
  %1129 = vmatprep.subr.bf16.mxu0 0
  %1130 = vmatpush1.bf16.msra.mxu0 0
  %1131 = vmatprep.subr.bf16.mxu0 0
  %1132 = vmatpush1.bf16.msra.mxu0 0
  %1133 = vmatprep.subr.bf16.mxu0 0
  %1134 = vmatpush1.bf16.msra.mxu0 0
  %1135 = vmatprep.mubr.bf16.mxu0 0
  %1136 = vmatmul.mubr.bf16.gmra.mrb[0].mxu0 %v1049
  %v1137 = vpop.f32.mrb[0].mxu0
  %v1138 = vadd.f32 %v1020, %v1137
  %v1139 = vpop.f32.mrb[0].mxu0
  %v1140 = vpop.f32.mrb[0].mxu0
  %v1141 = vadd.f32 %v1025, %v1140
  %v1142 = vpop.f32.mrb[0].mxu0
  %1143 = vmatprep.mubr.bf16.mxu0 0
  %1144 = vmatmul.mubr.bf16.gmra.mrb[0].mxu0 %v1052
  %v1145 = vpop.f32.mrb[0].mxu0
  %v1146 = vadd.f32 %v1030, %v1145
  %v1147 = vpop.f32.mrb[0].mxu0
  %v1148 = vpop.f32.mrb[0].mxu0
  %v1149 = vadd.f32 %v1035, %v1148
  %v1150 = vpop.f32.mrb[0].mxu0
  %1151 = vdwg.mxu0
  %1152 = vmatprep.subr.bf16.mxu0 0
  %1153 = vmatpush1.bf16.msra.mxu0 %v925
  %1154 = vmatprep.subr.bf16.mxu0 0
  %1155 = vmatpush1.bf16.msra.mxu0 %v926
  %1156 = vmatprep.subr.bf16.mxu0 0
  %1157 = vmatpush1.bf16.msra.mxu0 %v927
  %1158 = vmatprep.subr.bf16.mxu0 0
  %1159 = vmatpush1.bf16.msra.mxu0 %v928
  %1160 = vmatprep.subr.bf16.mxu0 0
  %1161 = vmatpush1.bf16.msra.mxu0 %v929
  %1162 = vmatprep.subr.bf16.mxu0 0
  %1163 = vmatpush1.bf16.msra.mxu0 %v930
  %1164 = vmatprep.subr.bf16.mxu0 0
  %1165 = vmatpush1.bf16.msra.mxu0 0
  %1166 = vmatprep.subr.bf16.mxu0 0
  %1167 = vmatpush1.bf16.msra.mxu0 0
  %1168 = vmatprep.subr.bf16.mxu0 0
  %1169 = vmatpush1.bf16.msra.mxu0 0
  %1170 = vmatprep.subr.bf16.mxu0 0
  %1171 = vmatpush1.bf16.msra.mxu0 0
  %1172 = vmatprep.subr.bf16.mxu0 0
  %1173 = vmatpush1.bf16.msra.mxu0 0
  %1174 = vmatprep.subr.bf16.mxu0 0
  %1175 = vmatpush1.bf16.msra.mxu0 0
  %1176 = vmatprep.subr.bf16.mxu0 0
  %1177 = vmatpush1.bf16.msra.mxu0 0
  %1178 = vmatprep.subr.bf16.mxu0 0
  %1179 = vmatpush1.bf16.msra.mxu0 0
  %1180 = vmatprep.subr.bf16.mxu0 0
  %1181 = vmatpush1.bf16.msra.mxu0 0
  %1182 = vmatprep.subr.bf16.mxu0 0
  %1183 = vmatpush1.bf16.msra.mxu0 0
  %1184 = vmatprep.mubr.bf16.mxu0 0
  %1185 = vmatmul.mubr.bf16.gmra.mrb[0].mxu0 %v1049
  %v1186 = vpop.f32.mrb[0].mxu0
  %v1187 = vadd.f32 %v1020, %v1186
  %v1188 = vpop.f32.mrb[0].mxu0
  %v1189 = vpop.f32.mrb[0].mxu0
  %v1190 = vadd.f32 %v1025, %v1189
  %v1191 = vpop.f32.mrb[0].mxu0
  %1192 = vmatprep.mubr.bf16.mxu0 0
  %1193 = vmatmul.mubr.bf16.gmra.mrb[0].mxu0 %v1052
  %v1194 = vpop.f32.mrb[0].mxu0
  %v1195 = vadd.f32 %v1030, %v1194
  %v1196 = vpop.f32.mrb[0].mxu0
  %v1197 = vpop.f32.mrb[0].mxu0
  %v1198 = vadd.f32 %v1035, %v1197
  %v1199 = vpop.f32.mrb[0].mxu0
  %1200 = vdwg.mxu0
  %1201 = vmatprep.subr.bf16.mxu0 0
  %1202 = vmatpush1.bf16.msra.mxu0 %v931
  %1203 = vmatprep.subr.bf16.mxu0 0
  %1204 = vmatpush1.bf16.msra.mxu0 %v932
  %1205 = vmatprep.subr.bf16.mxu0 0
  %1206 = vmatpush1.bf16.msra.mxu0 %v933
  %1207 = vmatprep.subr.bf16.mxu0 0
  %1208 = vmatpush1.bf16.msra.mxu0 %v934
  %1209 = vmatprep.subr.bf16.mxu0 0
  %1210 = vmatpush1.bf16.msra.mxu0 %v935
  %1211 = vmatprep.subr.bf16.mxu0 0
  %1212 = vmatpush1.bf16.msra.mxu0 %v936
  %1213 = vmatprep.subr.bf16.mxu0 0
  %1214 = vmatpush1.bf16.msra.mxu0 0
  %1215 = vmatprep.subr.bf16.mxu0 0
  %1216 = vmatpush1.bf16.msra.mxu0 0
  %1217 = vmatprep.subr.bf16.mxu0 0
  %1218 = vmatpush1.bf16.msra.mxu0 0
  %1219 = vmatprep.subr.bf16.mxu0 0
  %1220 = vmatpush1.bf16.msra.mxu0 0
  %1221 = vmatprep.subr.bf16.mxu0 0
  %1222 = vmatpush1.bf16.msra.mxu0 0
  %1223 = vmatprep.subr.bf16.mxu0 0
  %1224 = vmatpush1.bf16.msra.mxu0 0
  %1225 = vmatprep.subr.bf16.mxu0 0
  %1226 = vmatpush1.bf16.msra.mxu0 0
  %1227 = vmatprep.subr.bf16.mxu0 0
  %1228 = vmatpush1.bf16.msra.mxu0 0
  %1229 = vmatprep.subr.bf16.mxu0 0
  %1230 = vmatpush1.bf16.msra.mxu0 0
  %1231 = vmatprep.subr.bf16.mxu0 0
  %1232 = vmatpush1.bf16.msra.mxu0 0
  %1233 = vmatprep.mubr.bf16.mxu0 0
  %1234 = vmatmul.mubr.bf16.gmra.mrb[0].mxu0 %v1049
  %v1235 = vpop.f32.mrb[0].mxu0
  %v1236 = vadd.f32 %v1020, %v1235
  %v1237 = vpop.f32.mrb[0].mxu0
  %v1238 = vpop.f32.mrb[0].mxu0
  %v1239 = vadd.f32 %v1025, %v1238
  %v1240 = vpop.f32.mrb[0].mxu0
  %1241 = vmatprep.mubr.bf16.mxu0 0
  %1242 = vmatmul.mubr.bf16.gmra.mrb[0].mxu0 %v1052
  %v1243 = vpop.f32.mrb[0].mxu0
  %v1244 = vadd.f32 %v1030, %v1243
  %v1245 = vpop.f32.mrb[0].mxu0
  %v1246 = vpop.f32.mrb[0].mxu0
  %v1247 = vadd.f32 %v1035, %v1246
  %v1248 = vpop.f32.mrb[0].mxu0
  %1249 = vdwg.mxu0
  %1250 = vmatprep.subr.bf16.mxu0 0
  %1251 = vmatpush1.bf16.msra.mxu0 %v937
  %1252 = vmatprep.subr.bf16.mxu0 0
  %1253 = vmatpush1.bf16.msra.mxu0 %v938
  %1254 = vmatprep.subr.bf16.mxu0 0
  %1255 = vmatpush1.bf16.msra.mxu0 %v939
  %1256 = vmatprep.subr.bf16.mxu0 0
  %1257 = vmatpush1.bf16.msra.mxu0 %v940
  %1258 = vmatprep.subr.bf16.mxu0 0
  %1259 = vmatpush1.bf16.msra.mxu0 %v941
  %1260 = vmatprep.subr.bf16.mxu0 0
  %1261 = vmatpush1.bf16.msra.mxu0 %v942
  %1262 = vmatprep.subr.bf16.mxu0 0
  %1263 = vmatpush1.bf16.msra.mxu0 0
  %1264 = vmatprep.subr.bf16.mxu0 0
  %1265 = vmatpush1.bf16.msra.mxu0 0
  %1266 = vmatprep.subr.bf16.mxu0 0
  %1267 = vmatpush1.bf16.msra.mxu0 0
  %1268 = vmatprep.subr.bf16.mxu0 0
  %1269 = vmatpush1.bf16.msra.mxu0 0
  %1270 = vmatprep.subr.bf16.mxu0 0
  %1271 = vmatpush1.bf16.msra.mxu0 0
  %1272 = vmatprep.subr.bf16.mxu0 0
  %1273 = vmatpush1.bf16.msra.mxu0 0
  %1274 = vmatprep.subr.bf16.mxu0 0
  %1275 = vmatpush1.bf16.msra.mxu0 0
  %1276 = vmatprep.subr.bf16.mxu0 0
  %1277 = vmatpush1.bf16.msra.mxu0 0
  %1278 = vmatprep.subr.bf16.mxu0 0
  %1279 = vmatpush1.bf16.msra.mxu0 0
  %1280 = vmatprep.subr.bf16.mxu0 0
  %1281 = vmatpush1.bf16.msra.mxu0 0
  %1282 = vmatprep.mubr.bf16.mxu0 0
  %1283 = vmatmul.mubr.bf16.gmra.mrb[0].mxu0 %v1049
  %v1284 = vpop.f32.mrb[0].mxu0
  %v1285 = vadd.f32 %v1020, %v1284
  %v1286 = vpop.f32.mrb[0].mxu0
  %v1287 = vpop.f32.mrb[0].mxu0
  %v1288 = vadd.f32 %v1025, %v1287
  %v1289 = vpop.f32.mrb[0].mxu0
  %1290 = vmatprep.mubr.bf16.mxu0 0
  %1291 = vmatmul.mubr.bf16.gmra.mrb[0].mxu0 %v1052
  %v1292 = vpop.f32.mrb[0].mxu0
  %v1293 = vadd.f32 %v1030, %v1292
  %v1294 = vpop.f32.mrb[0].mxu0
  %v1295 = vpop.f32.mrb[0].mxu0
  %v1296 = vadd.f32 %v1035, %v1295
  %v1297 = vpop.f32.mrb[0].mxu0
  %1298 = vdwg.mxu0
  %1299 = vmatprep.subr.bf16.mxu0 0
  %1300 = vmatpush1.bf16.msra.mxu0 %v943
  %1301 = vmatprep.subr.bf16.mxu0 0
  %1302 = vmatpush1.bf16.msra.mxu0 %v944
  %1303 = vmatprep.subr.bf16.mxu0 0
  %1304 = vmatpush1.bf16.msra.mxu0 %v945
  %1305 = vmatprep.subr.bf16.mxu0 0
  %1306 = vmatpush1.bf16.msra.mxu0 %v946
  %1307 = vmatprep.subr.bf16.mxu0 0
  %1308 = vmatpush1.bf16.msra.mxu0 %v947
  %1309 = vmatprep.subr.bf16.mxu0 0
  %1310 = vmatpush1.bf16.msra.mxu0 %v948
  %1311 = vmatprep.subr.bf16.mxu0 0
  %1312 = vmatpush1.bf16.msra.mxu0 0
  %1313 = vmatprep.subr.bf16.mxu0 0
  %1314 = vmatpush1.bf16.msra.mxu0 0
  %1315 = vmatprep.subr.bf16.mxu0 0
  %1316 = vmatpush1.bf16.msra.mxu0 0
  %1317 = vmatprep.subr.bf16.mxu0 0
  %1318 = vmatpush1.bf16.msra.mxu0 0
  %1319 = vmatprep.subr.bf16.mxu0 0
  %1320 = vmatpush1.bf16.msra.mxu0 0
  %1321 = vmatprep.subr.bf16.mxu0 0
  %1322 = vmatpush1.bf16.msra.mxu0 0
  %1323 = vmatprep.subr.bf16.mxu0 0
  %1324 = vmatpush1.bf16.msra.mxu0 0
  %1325 = vmatprep.subr.bf16.mxu0 0
  %1326 = vmatpush1.bf16.msra.mxu0 0
  %1327 = vmatprep.subr.bf16.mxu0 0
  %1328 = vmatpush1.bf16.msra.mxu0 0
  %1329 = vmatprep.subr.bf16.mxu0 0
  %1330 = vmatpush1.bf16.msra.mxu0 0
  %1331 = vmatprep.mubr.bf16.mxu0 0
  %1332 = vmatmul.mubr.bf16.gmra.mrb[0].mxu0 %v1049
  %v1333 = vpop.f32.mrb[0].mxu0
  %v1334 = vadd.f32 %v1020, %v1333
  %v1335 = vpop.f32.mrb[0].mxu0
  %v1336 = vpop.f32.mrb[0].mxu0
  %v1337 = vadd.f32 %v1025, %v1336
  %v1338 = vpop.f32.mrb[0].mxu0
  %1339 = vmatprep.mubr.bf16.mxu0 0
  %1340 = vmatmul.mubr.bf16.gmra.mrb[0].mxu0 %v1052
  %v1341 = vpop.f32.mrb[0].mxu0
  %v1342 = vadd.f32 %v1030, %v1341
  %v1343 = vpop.f32.mrb[0].mxu0
  %v1344 = vpop.f32.mrb[0].mxu0
  %v1345 = vadd.f32 %v1035, %v1344
  %v1346 = vpop.f32.mrb[0].mxu0
  %1347 = vdwg.mxu0
  %1348 = vmatprep.subr.bf16.mxu0 0
  %1349 = vmatpush1.bf16.msra.mxu0 %v949
  %1350 = vmatprep.subr.bf16.mxu0 0
  %1351 = vmatpush1.bf16.msra.mxu0 %v950
  %1352 = vmatprep.subr.bf16.mxu0 0
  %1353 = vmatpush1.bf16.msra.mxu0 %v951
  %1354 = vmatprep.subr.bf16.mxu0 0
  %1355 = vmatpush1.bf16.msra.mxu0 %v952
  %1356 = vmatprep.subr.bf16.mxu0 0
  %1357 = vmatpush1.bf16.msra.mxu0 %v953
  %1358 = vmatprep.subr.bf16.mxu0 0
  %1359 = vmatpush1.bf16.msra.mxu0 %v954
  %1360 = vmatprep.subr.bf16.mxu0 0
  %1361 = vmatpush1.bf16.msra.mxu0 0
  %1362 = vmatprep.subr.bf16.mxu0 0
  %1363 = vmatpush1.bf16.msra.mxu0 0
  %1364 = vmatprep.subr.bf16.mxu0 0
  %1365 = vmatpush1.bf16.msra.mxu0 0
  %1366 = vmatprep.subr.bf16.mxu0 0
  %1367 = vmatpush1.bf16.msra.mxu0 0
  %1368 = vmatprep.subr.bf16.mxu0 0
  %1369 = vmatpush1.bf16.msra.mxu0 0
  %1370 = vmatprep.subr.bf16.mxu0 0
  %1371 = vmatpush1.bf16.msra.mxu0 0
  %1372 = vmatprep.subr.bf16.mxu0 0
  %1373 = vmatpush1.bf16.msra.mxu0 0
  %1374 = vmatprep.subr.bf16.mxu0 0
  %1375 = vmatpush1.bf16.msra.mxu0 0
  %1376 = vmatprep.subr.bf16.mxu0 0
  %1377 = vmatpush1.bf16.msra.mxu0 0
  %1378 = vmatprep.subr.bf16.mxu0 0
  %1379 = vmatpush1.bf16.msra.mxu0 0
  %1380 = vmatprep.mubr.bf16.mxu0 0
  %1381 = vmatmul.mubr.bf16.gmra.mrb[0].mxu0 %v1049
  %v1382 = vpop.f32.mrb[0].mxu0
  %v1383 = vadd.f32 %v1020, %v1382
  %v1384 = vpop.f32.mrb[0].mxu0
  %v1385 = vpop.f32.mrb[0].mxu0
  %v1386 = vadd.f32 %v1025, %v1385
  %v1387 = vpop.f32.mrb[0].mxu0
  %1388 = vmatprep.mubr.bf16.mxu0 0
  %1389 = vmatmul.mubr.bf16.gmra.mrb[0].mxu0 %v1052
  %v1390 = vpop.f32.mrb[0].mxu0
  %v1391 = vadd.f32 %v1030, %v1390
  %v1392 = vpop.f32.mrb[0].mxu0
  %v1393 = vpop.f32.mrb[0].mxu0
  %v1394 = vadd.f32 %v1035, %v1393
  %v1395 = vpop.f32.mrb[0].mxu0
  %1396 = vdwg.mxu0
  %1397 = vmatprep.subr.bf16.mxu0 0
  %1398 = vmatpush1.bf16.msra.mxu0 %v955
  %1399 = vmatprep.subr.bf16.mxu0 0
  %1400 = vmatpush1.bf16.msra.mxu0 %v956
  %1401 = vmatprep.subr.bf16.mxu0 0
  %1402 = vmatpush1.bf16.msra.mxu0 %v957
  %1403 = vmatprep.subr.bf16.mxu0 0
  %1404 = vmatpush1.bf16.msra.mxu0 %v958
  %1405 = vmatprep.subr.bf16.mxu0 0
  %1406 = vmatpush1.bf16.msra.mxu0 %v959
  %1407 = vmatprep.subr.bf16.mxu0 0
  %1408 = vmatpush1.bf16.msra.mxu0 %v960
  %1409 = vmatprep.subr.bf16.mxu0 0
  %1410 = vmatpush1.bf16.msra.mxu0 0
  %1411 = vmatprep.subr.bf16.mxu0 0
  %1412 = vmatpush1.bf16.msra.mxu0 0
  %1413 = vmatprep.subr.bf16.mxu0 0
  %1414 = vmatpush1.bf16.msra.mxu0 0
  %1415 = vmatprep.subr.bf16.mxu0 0
  %1416 = vmatpush1.bf16.msra.mxu0 0
  %1417 = vmatprep.subr.bf16.mxu0 0
  %1418 = vmatpush1.bf16.msra.mxu0 0
  %1419 = vmatprep.subr.bf16.mxu0 0
  %1420 = vmatpush1.bf16.msra.mxu0 0
  %1421 = vmatprep.subr.bf16.mxu0 0
  %1422 = vmatpush1.bf16.msra.mxu0 0
  %1423 = vmatprep.subr.bf16.mxu0 0
  %1424 = vmatpush1.bf16.msra.mxu0 0
  %1425 = vmatprep.subr.bf16.mxu0 0
  %1426 = vmatpush1.bf16.msra.mxu0 0
  %1427 = vmatprep.subr.bf16.mxu0 0
  %1428 = vmatpush1.bf16.msra.mxu0 0
  %1429 = vmatprep.mubr.bf16.mxu0 0
  %1430 = vmatmul.mubr.bf16.gmra.mrb[0].mxu0 %v1049
  %v1431 = vpop.f32.mrb[0].mxu0
  %v1432 = vadd.f32 %v1020, %v1431
  %v1433 = vpop.f32.mrb[0].mxu0
  %v1434 = vpop.f32.mrb[0].mxu0
  %v1435 = vadd.f32 %v1025, %v1434
  %v1436 = vpop.f32.mrb[0].mxu0
  %1437 = vmatprep.mubr.bf16.mxu0 0
  %1438 = vmatmul.mubr.bf16.gmra.mrb[0].mxu0 %v1052
  %v1439 = vpop.f32.mrb[0].mxu0
  %v1440 = vadd.f32 %v1030, %v1439
  %v1441 = vpop.f32.mrb[0].mxu0
  %v1442 = vpop.f32.mrb[0].mxu0
  %v1443 = vadd.f32 %v1035, %v1442
  %v1444 = vpop.f32.mrb[0].mxu0
  %1445 = vdwg.mxu0
  %1446 = vmatprep.subr.bf16.mxu0 0
  %1447 = vmatpush1.bf16.msra.mxu0 %v961
  %1448 = vmatprep.subr.bf16.mxu0 0
  %1449 = vmatpush1.bf16.msra.mxu0 %v962
  %1450 = vmatprep.subr.bf16.mxu0 0
  %1451 = vmatpush1.bf16.msra.mxu0 %v963
  %1452 = vmatprep.subr.bf16.mxu0 0
  %1453 = vmatpush1.bf16.msra.mxu0 %v964
  %1454 = vmatprep.subr.bf16.mxu0 0
  %1455 = vmatpush1.bf16.msra.mxu0 %v965
  %1456 = vmatprep.subr.bf16.mxu0 0
  %1457 = vmatpush1.bf16.msra.mxu0 %v966
  %1458 = vmatprep.subr.bf16.mxu0 0
  %1459 = vmatpush1.bf16.msra.mxu0 0
  %1460 = vmatprep.subr.bf16.mxu0 0
  %1461 = vmatpush1.bf16.msra.mxu0 0
  %1462 = vmatprep.subr.bf16.mxu0 0
  %1463 = vmatpush1.bf16.msra.mxu0 0
  %1464 = vmatprep.subr.bf16.mxu0 0
  %1465 = vmatpush1.bf16.msra.mxu0 0
  %1466 = vmatprep.subr.bf16.mxu0 0
  %1467 = vmatpush1.bf16.msra.mxu0 0
  %1468 = vmatprep.subr.bf16.mxu0 0
  %1469 = vmatpush1.bf16.msra.mxu0 0
  %1470 = vmatprep.subr.bf16.mxu0 0
  %1471 = vmatpush1.bf16.msra.mxu0 0
  %1472 = vmatprep.subr.bf16.mxu0 0
  %1473 = vmatpush1.bf16.msra.mxu0 0
  %1474 = vmatprep.subr.bf16.mxu0 0
  %1475 = vmatpush1.bf16.msra.mxu0 0
  %1476 = vmatprep.subr.bf16.mxu0 0
  %1477 = vmatpush1.bf16.msra.mxu0 0
  %1478 = vmatprep.mubr.bf16.mxu0 0
  %1479 = vmatmul.mubr.bf16.gmra.mrb[0].mxu0 %v1049
  %v1480 = vpop.f32.mrb[0].mxu0
  %v1481 = vadd.f32 %v1020, %v1480
  %v1482 = vpop.f32.mrb[0].mxu0
  %v1483 = vpop.f32.mrb[0].mxu0
  %v1484 = vadd.f32 %v1025, %v1483
  %v1485 = vpop.f32.mrb[0].mxu0
  %1486 = vmatprep.mubr.bf16.mxu0 0
  %1487 = vmatmul.mubr.bf16.gmra.mrb[0].mxu0 %v1052
  %v1488 = vpop.f32.mrb[0].mxu0
  %v1489 = vadd.f32 %v1030, %v1488
  %v1490 = vpop.f32.mrb[0].mxu0
  %v1491 = vpop.f32.mrb[0].mxu0
  %v1492 = vadd.f32 %v1035, %v1491
  %v1493 = vpop.f32.mrb[0].mxu0
  %1494 = vdwg.mxu0
  %1495 = vmatprep.subr.bf16.mxu0 0
  %1496 = vmatpush1.bf16.msra.mxu0 %v967
  %1497 = vmatprep.subr.bf16.mxu0 0
  %1498 = vmatpush1.bf16.msra.mxu0 %v968
  %1499 = vmatprep.subr.bf16.mxu0 0
  %1500 = vmatpush1.bf16.msra.mxu0 %v969
  %1501 = vmatprep.subr.bf16.mxu0 0
  %1502 = vmatpush1.bf16.msra.mxu0 %v970
  %1503 = vmatprep.subr.bf16.mxu0 0
  %1504 = vmatpush1.bf16.msra.mxu0 %v971
  %1505 = vmatprep.subr.bf16.mxu0 0
  %1506 = vmatpush1.bf16.msra.mxu0 %v972
  %1507 = vmatprep.subr.bf16.mxu0 0
  %1508 = vmatpush1.bf16.msra.mxu0 0
  %1509 = vmatprep.subr.bf16.mxu0 0
  %1510 = vmatpush1.bf16.msra.mxu0 0
  %1511 = vmatprep.subr.bf16.mxu0 0
  %1512 = vmatpush1.bf16.msra.mxu0 0
  %1513 = vmatprep.subr.bf16.mxu0 0
  %1514 = vmatpush1.bf16.msra.mxu0 0
  %1515 = vmatprep.subr.bf16.mxu0 0
  %1516 = vmatpush1.bf16.msra.mxu0 0
  %1517 = vmatprep.subr.bf16.mxu0 0
  %1518 = vmatpush1.bf16.msra.mxu0 0
  %1519 = vmatprep.subr.bf16.mxu0 0
  %1520 = vmatpush1.bf16.msra.mxu0 0
  %1521 = vmatprep.subr.bf16.mxu0 0
  %1522 = vmatpush1.bf16.msra.mxu0 0
  %1523 = vmatprep.subr.bf16.mxu0 0
  %1524 = vmatpush1.bf16.msra.mxu0 0
  %1525 = vmatprep.subr.bf16.mxu0 0
  %1526 = vmatpush1.bf16.msra.mxu0 0
  %1527 = vmatprep.mubr.bf16.mxu0 0
  %1528 = vmatmul.mubr.bf16.gmra.mrb[0].mxu0 %v1049
  %v1529 = vpop.f32.mrb[0].mxu0
  %v1530 = vadd.f32 %v1020, %v1529
  %v1531 = vpop.f32.mrb[0].mxu0
  %v1532 = vpop.f32.mrb[0].mxu0
  %v1533 = vadd.f32 %v1025, %v1532
  %v1534 = vpop.f32.mrb[0].mxu0
  %1535 = vmatprep.mubr.bf16.mxu0 0
  %1536 = vmatmul.mubr.bf16.gmra.mrb[0].mxu0 %v1052
  %v1537 = vpop.f32.mrb[0].mxu0
  %v1538 = vadd.f32 %v1030, %v1537
  %v1539 = vpop.f32.mrb[0].mxu0
  %v1540 = vpop.f32.mrb[0].mxu0
  %v1541 = vadd.f32 %v1035, %v1540
  %v1542 = vpop.f32.mrb[0].mxu0
  %1543 = vdwg.mxu0
  %1544 = vmatprep.subr.bf16.mxu0 0
  %1545 = vmatpush1.bf16.msra.mxu0 %v973
  %1546 = vmatprep.subr.bf16.mxu0 0
  %1547 = vmatpush1.bf16.msra.mxu0 %v974
  %1548 = vmatprep.subr.bf16.mxu0 0
  %1549 = vmatpush1.bf16.msra.mxu0 %v975
  %1550 = vmatprep.subr.bf16.mxu0 0
  %1551 = vmatpush1.bf16.msra.mxu0 %v976
  %1552 = vmatprep.subr.bf16.mxu0 0
  %1553 = vmatpush1.bf16.msra.mxu0 %v977
  %1554 = vmatprep.subr.bf16.mxu0 0
  %1555 = vmatpush1.bf16.msra.mxu0 %v978
  %1556 = vmatprep.subr.bf16.mxu0 0
  %1557 = vmatpush1.bf16.msra.mxu0 0
  %1558 = vmatprep.subr.bf16.mxu0 0
  %1559 = vmatpush1.bf16.msra.mxu0 0
  %1560 = vmatprep.subr.bf16.mxu0 0
  %1561 = vmatpush1.bf16.msra.mxu0 0
  %1562 = vmatprep.subr.bf16.mxu0 0
  %1563 = vmatpush1.bf16.msra.mxu0 0
  %1564 = vmatprep.subr.bf16.mxu0 0
  %1565 = vmatpush1.bf16.msra.mxu0 0
  %1566 = vmatprep.subr.bf16.mxu0 0
  %1567 = vmatpush1.bf16.msra.mxu0 0
  %1568 = vmatprep.subr.bf16.mxu0 0
  %1569 = vmatpush1.bf16.msra.mxu0 0
  %1570 = vmatprep.subr.bf16.mxu0 0
  %1571 = vmatpush1.bf16.msra.mxu0 0
  %1572 = vmatprep.subr.bf16.mxu0 0
  %1573 = vmatpush1.bf16.msra.mxu0 0
  %1574 = vmatprep.subr.bf16.mxu0 0
  %1575 = vmatpush1.bf16.msra.mxu0 0
  %1576 = vmatprep.mubr.bf16.mxu0 0
  %1577 = vmatmul.mubr.bf16.gmra.mrb[0].mxu0 %v1049
  %v1578 = vpop.f32.mrb[0].mxu0
  %v1579 = vadd.f32 %v1020, %v1578
  %v1580 = vpop.f32.mrb[0].mxu0
  %v1581 = vpop.f32.mrb[0].mxu0
  %v1582 = vadd.f32 %v1025, %v1581
  %v1583 = vpop.f32.mrb[0].mxu0
  %1584 = vmatprep.mubr.bf16.mxu0 0
  %1585 = vmatmul.mubr.bf16.gmra.mrb[0].mxu0 %v1052
  %v1586 = vpop.f32.mrb[0].mxu0
  %v1587 = vadd.f32 %v1030, %v1586
  %v1588 = vpop.f32.mrb[0].mxu0
  %v1589 = vpop.f32.mrb[0].mxu0
  %v1590 = vadd.f32 %v1035, %v1589
  %v1591 = vpop.f32.mrb[0].mxu0
  %1592 = vdwg.mxu0
  %1593 = vmatprep.subr.bf16.mxu0 0
  %1594 = vmatpush1.bf16.msra.mxu0 %v979
  %1595 = vmatprep.subr.bf16.mxu0 0
  %1596 = vmatpush1.bf16.msra.mxu0 %v980
  %1597 = vmatprep.subr.bf16.mxu0 0
  %1598 = vmatpush1.bf16.msra.mxu0 %v981
  %1599 = vmatprep.subr.bf16.mxu0 0
  %1600 = vmatpush1.bf16.msra.mxu0 %v982
  %1601 = vmatprep.subr.bf16.mxu0 0
  %1602 = vmatpush1.bf16.msra.mxu0 %v983
  %1603 = vmatprep.subr.bf16.mxu0 0
  %1604 = vmatpush1.bf16.msra.mxu0 %v984
  %1605 = vmatprep.subr.bf16.mxu0 0
  %1606 = vmatpush1.bf16.msra.mxu0 0
  %1607 = vmatprep.subr.bf16.mxu0 0
  %1608 = vmatpush1.bf16.msra.mxu0 0
  %1609 = vmatprep.subr.bf16.mxu0 0
  %1610 = vmatpush1.bf16.msra.mxu0 0
  %1611 = vmatprep.subr.bf16.mxu0 0
  %1612 = vmatpush1.bf16.msra.mxu0 0
  %1613 = vmatprep.subr.bf16.mxu0 0
  %1614 = vmatpush1.bf16.msra.mxu0 0
  %1615 = vmatprep.subr.bf16.mxu0 0
  %1616 = vmatpush1.bf16.msra.mxu0 0
  %1617 = vmatprep.subr.bf16.mxu0 0
  %1618 = vmatpush1.bf16.msra.mxu0 0
  %1619 = vmatprep.subr.bf16.mxu0 0
  %1620 = vmatpush1.bf16.msra.mxu0 0
  %1621 = vmatprep.subr.bf16.mxu0 0
  %1622 = vmatpush1.bf16.msra.mxu0 0
  %1623 = vmatprep.subr.bf16.mxu0 0
  %1624 = vmatpush1.bf16.msra.mxu0 0
  %1625 = vmatprep.mubr.bf16.mxu0 0
  %1626 = vmatmul.mubr.bf16.gmra.mrb[0].mxu0 %v1049
  %v1627 = vpop.f32.mrb[0].mxu0
  %v1628 = vadd.f32 %v1020, %v1627
  %v1629 = vpop.f32.mrb[0].mxu0
  %v1630 = vpop.f32.mrb[0].mxu0
  %v1631 = vadd.f32 %v1025, %v1630
  %v1632 = vpop.f32.mrb[0].mxu0
  %1633 = vmatprep.mubr.bf16.mxu0 0
  %1634 = vmatmul.mubr.bf16.gmra.mrb[0].mxu0 %v1052
  %v1635 = vpop.f32.mrb[0].mxu0
  %v1636 = vadd.f32 %v1030, %v1635
  %v1637 = vpop.f32.mrb[0].mxu0
  %v1638 = vpop.f32.mrb[0].mxu0
  %v1639 = vadd.f32 %v1035, %v1638
  %v1640 = vpop.f32.mrb[0].mxu0
  %1641 = vdwg.mxu0
  %1642 = vmatprep.subr.bf16.mxu0 0
  %1643 = vmatpush1.bf16.msra.mxu0 %v985
  %1644 = vmatprep.subr.bf16.mxu0 0
  %1645 = vmatpush1.bf16.msra.mxu0 %v986
  %1646 = vmatprep.subr.bf16.mxu0 0
  %1647 = vmatpush1.bf16.msra.mxu0 %v987
  %1648 = vmatprep.subr.bf16.mxu0 0
  %1649 = vmatpush1.bf16.msra.mxu0 %v988
  %1650 = vmatprep.subr.bf16.mxu0 0
  %1651 = vmatpush1.bf16.msra.mxu0 %v989
  %1652 = vmatprep.subr.bf16.mxu0 0
  %1653 = vmatpush1.bf16.msra.mxu0 %v990
  %1654 = vmatprep.subr.bf16.mxu0 0
  %1655 = vmatpush1.bf16.msra.mxu0 0
  %1656 = vmatprep.subr.bf16.mxu0 0
  %1657 = vmatpush1.bf16.msra.mxu0 0
  %1658 = vmatprep.subr.bf16.mxu0 0
  %1659 = vmatpush1.bf16.msra.mxu0 0
  %1660 = vmatprep.subr.bf16.mxu0 0
  %1661 = vmatpush1.bf16.msra.mxu0 0
  %1662 = vmatprep.subr.bf16.mxu0 0
  %1663 = vmatpush1.bf16.msra.mxu0 0
  %1664 = vmatprep.subr.bf16.mxu0 0
  %1665 = vmatpush1.bf16.msra.mxu0 0
  %1666 = vmatprep.subr.bf16.mxu0 0
  %1667 = vmatpush1.bf16.msra.mxu0 0
  %1668 = vmatprep.subr.bf16.mxu0 0
  %1669 = vmatpush1.bf16.msra.mxu0 0
  %1670 = vmatprep.subr.bf16.mxu0 0
  %1671 = vmatpush1.bf16.msra.mxu0 0
  %1672 = vmatprep.subr.bf16.mxu0 0
  %1673 = vmatpush1.bf16.msra.mxu0 0
  %1674 = vmatprep.mubr.bf16.mxu0 0
  %1675 = vmatmul.mubr.bf16.gmra.mrb[0].mxu0 %v1049
  %v1676 = vpop.f32.mrb[0].mxu0
  %v1677 = vadd.f32 %v1020, %v1676
  %v1678 = vpop.f32.mrb[0].mxu0
  %v1679 = vpop.f32.mrb[0].mxu0
  %v1680 = vadd.f32 %v1025, %v1679
  %v1681 = vpop.f32.mrb[0].mxu0
  %1682 = vmatprep.mubr.bf16.mxu0 0
  %1683 = vmatmul.mubr.bf16.gmra.mrb[0].mxu0 %v1052
  %v1684 = vpop.f32.mrb[0].mxu0
  %v1685 = vadd.f32 %v1030, %v1684
  %v1686 = vpop.f32.mrb[0].mxu0
  %v1687 = vpop.f32.mrb[0].mxu0
  %v1688 = vadd.f32 %v1035, %v1687
  %v1689 = vpop.f32.mrb[0].mxu0
  %1690 = vdwg.mxu0
  %1691 = vmatprep.subr.bf16.mxu0 0
  %1692 = vmatpush1.bf16.msra.mxu0 %v991
  %1693 = vmatprep.subr.bf16.mxu0 0
  %1694 = vmatpush1.bf16.msra.mxu0 %v992
  %1695 = vmatprep.subr.bf16.mxu0 0
  %1696 = vmatpush1.bf16.msra.mxu0 %v993
  %1697 = vmatprep.subr.bf16.mxu0 0
  %1698 = vmatpush1.bf16.msra.mxu0 %v994
  %1699 = vmatprep.subr.bf16.mxu0 0
  %1700 = vmatpush1.bf16.msra.mxu0 %v995
  %1701 = vmatprep.subr.bf16.mxu0 0
  %1702 = vmatpush1.bf16.msra.mxu0 %v996
  %1703 = vmatprep.subr.bf16.mxu0 0
  %1704 = vmatpush1.bf16.msra.mxu0 0
  %1705 = vmatprep.subr.bf16.mxu0 0
  %1706 = vmatpush1.bf16.msra.mxu0 0
  %1707 = vmatprep.subr.bf16.mxu0 0
  %1708 = vmatpush1.bf16.msra.mxu0 0
  %1709 = vmatprep.subr.bf16.mxu0 0
  %1710 = vmatpush1.bf16.msra.mxu0 0
  %1711 = vmatprep.subr.bf16.mxu0 0
  %1712 = vmatpush1.bf16.msra.mxu0 0
  %1713 = vmatprep.subr.bf16.mxu0 0
  %1714 = vmatpush1.bf16.msra.mxu0 0
  %1715 = vmatprep.subr.bf16.mxu0 0
  %1716 = vmatpush1.bf16.msra.mxu0 0
  %1717 = vmatprep.subr.bf16.mxu0 0
  %1718 = vmatpush1.bf16.msra.mxu0 0
  %1719 = vmatprep.subr.bf16.mxu0 0
  %1720 = vmatpush1.bf16.msra.mxu0 0
  %1721 = vmatprep.subr.bf16.mxu0 0
  %1722 = vmatpush1.bf16.msra.mxu0 0
  %1723 = vmatprep.mubr.bf16.mxu0 0
  %1724 = vmatmul.mubr.bf16.gmra.mrb[0].mxu0 %v1049
  %v1725 = vpop.f32.mrb[0].mxu0
  %v1726 = vadd.f32 %v1020, %v1725
  %v1727 = vpop.f32.mrb[0].mxu0
  %v1728 = vpop.f32.mrb[0].mxu0
  %v1729 = vadd.f32 %v1025, %v1728
  %v1730 = vpop.f32.mrb[0].mxu0
  %1731 = vmatprep.mubr.bf16.mxu0 0
  %1732 = vmatmul.mubr.bf16.gmra.mrb[0].mxu0 %v1052
  %v1733 = vpop.f32.mrb[0].mxu0
  %v1734 = vadd.f32 %v1030, %v1733
  %v1735 = vpop.f32.mrb[0].mxu0
  %v1736 = vpop.f32.mrb[0].mxu0
  %v1737 = vadd.f32 %v1035, %v1736
  %v1738 = vpop.f32.mrb[0].mxu0
  %1739 = vdwg.mxu0
  %1740 = vmatprep.subr.bf16.mxu0 0
  %1741 = vmatpush1.bf16.msra.mxu0 %v997
  %1742 = vmatprep.subr.bf16.mxu0 0
  %1743 = vmatpush1.bf16.msra.mxu0 %v998
  %1744 = vmatprep.subr.bf16.mxu0 0
  %1745 = vmatpush1.bf16.msra.mxu0 %v999
  %1746 = vmatprep.subr.bf16.mxu0 0
  %1747 = vmatpush1.bf16.msra.mxu0 %v1000
  %1748 = vmatprep.subr.bf16.mxu0 0
  %1749 = vmatpush1.bf16.msra.mxu0 %v1001
  %1750 = vmatprep.subr.bf16.mxu0 0
  %1751 = vmatpush1.bf16.msra.mxu0 %v1002
  %1752 = vmatprep.subr.bf16.mxu0 0
  %1753 = vmatpush1.bf16.msra.mxu0 0
  %1754 = vmatprep.subr.bf16.mxu0 0
  %1755 = vmatpush1.bf16.msra.mxu0 0
  %1756 = vmatprep.subr.bf16.mxu0 0
  %1757 = vmatpush1.bf16.msra.mxu0 0
  %1758 = vmatprep.subr.bf16.mxu0 0
  %1759 = vmatpush1.bf16.msra.mxu0 0
  %1760 = vmatprep.subr.bf16.mxu0 0
  %1761 = vmatpush1.bf16.msra.mxu0 0
  %1762 = vmatprep.subr.bf16.mxu0 0
  %1763 = vmatpush1.bf16.msra.mxu0 0
  %1764 = vmatprep.subr.bf16.mxu0 0
  %1765 = vmatpush1.bf16.msra.mxu0 0
  %1766 = vmatprep.subr.bf16.mxu0 0
  %1767 = vmatpush1.bf16.msra.mxu0 0
  %1768 = vmatprep.subr.bf16.mxu0 0
  %1769 = vmatpush1.bf16.msra.mxu0 0
  %1770 = vmatprep.subr.bf16.mxu0 0
  %1771 = vmatpush1.bf16.msra.mxu0 0
  %1772 = vmatprep.mubr.bf16.mxu0 0
  %1773 = vmatmul.mubr.bf16.gmra.mrb[0].mxu0 %v1049
  %v1774 = vpop.f32.mrb[0].mxu0
  %v1775 = vadd.f32 %v1020, %v1774
  %v1776 = vpop.f32.mrb[0].mxu0
  %v1777 = vpop.f32.mrb[0].mxu0
  %v1778 = vadd.f32 %v1025, %v1777
  %v1779 = vpop.f32.mrb[0].mxu0
  %1780 = vmatprep.mubr.bf16.mxu0 0
  %1781 = vmatmul.mubr.bf16.gmra.mrb[0].mxu0 %v1052
  %v1782 = vpop.f32.mrb[0].mxu0
  %v1783 = vadd.f32 %v1030, %v1782
  %v1784 = vpop.f32.mrb[0].mxu0
  %v1785 = vpop.f32.mrb[0].mxu0
  %v1786 = vadd.f32 %v1035, %v1785
  %v1787 = vpop.f32.mrb[0].mxu0
  %1788 = vdwg.mxu0
  %1789 = vmatprep.subr.bf16.mxu0 0
  %1790 = vmatpush1.bf16.msra.mxu0 %v1003
  %1791 = vmatprep.subr.bf16.mxu0 0
  %1792 = vmatpush1.bf16.msra.mxu0 %v1004
  %1793 = vmatprep.subr.bf16.mxu0 0
  %1794 = vmatpush1.bf16.msra.mxu0 %v1005
  %1795 = vmatprep.subr.bf16.mxu0 0
  %1796 = vmatpush1.bf16.msra.mxu0 %v1006
  %1797 = vmatprep.subr.bf16.mxu0 0
  %1798 = vmatpush1.bf16.msra.mxu0 %v1007
  %1799 = vmatprep.subr.bf16.mxu0 0
  %1800 = vmatpush1.bf16.msra.mxu0 %v1008
  %1801 = vmatprep.subr.bf16.mxu0 0
  %1802 = vmatpush1.bf16.msra.mxu0 0
  %1803 = vmatprep.subr.bf16.mxu0 0
  %1804 = vmatpush1.bf16.msra.mxu0 0
  %1805 = vmatprep.subr.bf16.mxu0 0
  %1806 = vmatpush1.bf16.msra.mxu0 0
  %1807 = vmatprep.subr.bf16.mxu0 0
  %1808 = vmatpush1.bf16.msra.mxu0 0
  %1809 = vmatprep.subr.bf16.mxu0 0
  %1810 = vmatpush1.bf16.msra.mxu0 0
  %1811 = vmatprep.subr.bf16.mxu0 0
  %1812 = vmatpush1.bf16.msra.mxu0 0
  %1813 = vmatprep.subr.bf16.mxu0 0
  %1814 = vmatpush1.bf16.msra.mxu0 0
  %1815 = vmatprep.subr.bf16.mxu0 0
  %1816 = vmatpush1.bf16.msra.mxu0 0
  %1817 = vmatprep.subr.bf16.mxu0 0
  %1818 = vmatpush1.bf16.msra.mxu0 0
  %1819 = vmatprep.subr.bf16.mxu0 0
  %1820 = vmatpush1.bf16.msra.mxu0 0
  %1821 = vmatprep.mubr.bf16.mxu0 0
  %1822 = vmatmul.mubr.bf16.gmra.mrb[0].mxu0 %v1049
  %v1823 = vpop.f32.mrb[0].mxu0
  %v1824 = vadd.f32 %v1020, %v1823
  %v1825 = vpop.f32.mrb[0].mxu0
  %v1826 = vpop.f32.mrb[0].mxu0
  %v1827 = vadd.f32 %v1025, %v1826
  %v1828 = vpop.f32.mrb[0].mxu0
  %1829 = vmatprep.mubr.bf16.mxu0 0
  %1830 = vmatmul.mubr.bf16.gmra.mrb[0].mxu0 %v1052
  %v1831 = vpop.f32.mrb[0].mxu0
  %v1832 = vadd.f32 %v1030, %v1831
  %v1833 = vpop.f32.mrb[0].mxu0
  %v1834 = vpop.f32.mrb[0].mxu0
  %v1835 = vadd.f32 %v1035, %v1834
  %v1836 = vpop.f32.mrb[0].mxu0
  %1837 = vdwg.mxu0
  %v1838 = vmax.f32 %v1089, 0.0
  %v1839 = vmax.f32 %v1092, 0.0
  %v1840 = vmax.f32 %v1097, 0.0
  %v1841 = vmax.f32 %v1100, 0.0
  %v1842 = vmax.f32 %v1138, 0.0
  %v1843 = vmax.f32 %v1141, 0.0
  %v1844 = vmax.f32 %v1146, 0.0
  %v1845 = vmax.f32 %v1149, 0.0
  %v1846 = vmax.f32 %v1187, 0.0
  %v1847 = vmax.f32 %v1190, 0.0
  %v1848 = vmax.f32 %v1195, 0.0
  %v1849 = vmax.f32 %v1198, 0.0
  %v1850 = vmax.f32 %v1236, 0.0
  %v1851 = vmax.f32 %v1239, 0.0
  %v1852 = vmax.f32 %v1244, 0.0
  %v1853 = vmax.f32 %v1247, 0.0
  %v1854 = vmax.f32 %v1285, 0.0
  %v1855 = vmax.f32 %v1288, 0.0
  %v1856 = vmax.f32 %v1293, 0.0
  %v1857 = vmax.f32 %v1296, 0.0
  %v1858 = vmax.f32 %v1334, 0.0
  %v1859 = vmax.f32 %v1337, 0.0
  %v1860 = vmax.f32 %v1342, 0.0
  %v1861 = vmax.f32 %v1345, 0.0
  %v1862 = vmax.f32 %v1383, 0.0
  %v1863 = vmax.f32 %v1386, 0.0
  %v1864 = vmax.f32 %v1391, 0.0
  %v1865 = vmax.f32 %v1394, 0.0
  %v1866 = vmax.f32 %v1432, 0.0
  %v1867 = vmax.f32 %v1435, 0.0
  %v1868 = vmax.f32 %v1440, 0.0
  %v1869 = vmax.f32 %v1443, 0.0
  %v1870 = vmax.f32 %v1481, 0.0
  %v1871 = vmax.f32 %v1484, 0.0
  %v1872 = vmax.f32 %v1489, 0.0
  %v1873 = vmax.f32 %v1492, 0.0
  %v1874 = vmax.f32 %v1530, 0.0
  %v1875 = vmax.f32 %v1533, 0.0
  %v1876 = vmax.f32 %v1538, 0.0
  %v1877 = vmax.f32 %v1541, 0.0
  %v1878 = vmax.f32 %v1579, 0.0
  %v1879 = vmax.f32 %v1582, 0.0
  %v1880 = vmax.f32 %v1587, 0.0
  %v1881 = vmax.f32 %v1590, 0.0
  %v1882 = vmax.f32 %v1628, 0.0
  %v1883 = vmax.f32 %v1631, 0.0
  %v1884 = vmax.f32 %v1636, 0.0
  %v1885 = vmax.f32 %v1639, 0.0
  %v1886 = vmax.f32 %v1677, 0.0
  %v1887 = vmax.f32 %v1680, 0.0
  %v1888 = vmax.f32 %v1685, 0.0
  %v1889 = vmax.f32 %v1688, 0.0
  %v1890 = vmax.f32 %v1726, 0.0
  %v1891 = vmax.f32 %v1729, 0.0
  %v1892 = vmax.f32 %v1734, 0.0
  %v1893 = vmax.f32 %v1737, 0.0
  %v1894 = vmax.f32 %v1775, 0.0
  %v1895 = vmax.f32 %v1778, 0.0
  %v1896 = vmax.f32 %v1783, 0.0
  %v1897 = vmax.f32 %v1786, 0.0
  %v1898 = vmax.f32 %v1824, 0.0
  %v1899 = vmax.f32 %v1827, 0.0
  %v1900 = vmax.f32 %v1832, 0.0
  %v1901 = vmax.f32 %v1835, 0.0
  %v1902 = vadd.f32 %v15, %v1838
  %v1903 = vadd.f32 %v16, %v1839
  %v1904 = vadd.f32 %v17, %v1840
  %v1905 = vadd.f32 %v18, %v1841
  %v1906 = vadd.f32 %v19, %v1842
  %v1907 = vadd.f32 %v20, %v1843
  %v1908 = vadd.f32 %v21, %v1844
  %v1909 = vadd.f32 %v22, %v1845
  %v1910 = vadd.f32 %v23, %v1846
  %v1911 = vadd.f32 %v24, %v1847
  %v1912 = vadd.f32 %v25, %v1848
  %v1913 = vadd.f32 %v26, %v1849
  %v1914 = vadd.f32 %v27, %v1850
  %v1915 = vadd.f32 %v28, %v1851
  %v1916 = vadd.f32 %v29, %v1852
  %v1917 = vadd.f32 %v30, %v1853
  %v1918 = vadd.f32 %v31, %v1854
  %v1919 = vadd.f32 %v32, %v1855
  %v1920 = vadd.f32 %v33, %v1856
  %v1921 = vadd.f32 %v34, %v1857
  %v1922 = vadd.f32 %v35, %v1858
  %v1923 = vadd.f32 %v36, %v1859
  %v1924 = vadd.f32 %v37, %v1860
  %v1925 = vadd.f32 %v38, %v1861
  %v1926 = vadd.f32 %v39, %v1862
  %v1927 = vadd.f32 %v40, %v1863
  %v1928 = vadd.f32 %v41, %v1864
  %v1929 = vadd.f32 %v42, %v1865
  %v1930 = vadd.f32 %v43, %v1866
  %v1931 = vadd.f32 %v44, %v1867
  %v1932 = vadd.f32 %v45, %v1868
  %v1933 = vadd.f32 %v46, %v1869
  %v1934 = vadd.f32 %v47, %v1870
  %v1935 = vadd.f32 %v48, %v1871
  %v1936 = vadd.f32 %v49, %v1872
  %v1937 = vadd.f32 %v50, %v1873
  %v1938 = vadd.f32 %v51, %v1874
  %v1939 = vadd.f32 %v52, %v1875
  %v1940 = vadd.f32 %v53, %v1876
  %v1941 = vadd.f32 %v54, %v1877
  %v1942 = vadd.f32 %v55, %v1878
  %v1943 = vadd.f32 %v56, %v1879
  %v1944 = vadd.f32 %v57, %v1880
  %v1945 = vadd.f32 %v58, %v1881
  %v1946 = vadd.f32 %v59, %v1882
  %v1947 = vadd.f32 %v60, %v1883
  %v1948 = vadd.f32 %v61, %v1884
  %v1949 = vadd.f32 %v62, %v1885
  %v1950 = vadd.f32 %v63, %v1886
  %v1951 = vadd.f32 %v64, %v1887
  %v1952 = vadd.f32 %v65, %v1888
  %v1953 = vadd.f32 %v66, %v1889
  %v1954 = vadd.f32 %v67, %v1890
  %v1955 = vadd.f32 %v68, %v1891
  %v1956 = vadd.f32 %v69, %v1892
  %v1957 = vadd.f32 %v70, %v1893
  %v1958 = vadd.f32 %v71, %v1894
  %v1959 = vadd.f32 %v72, %v1895
  %v1960 = vadd.f32 %v73, %v1896
  %v1961 = vadd.f32 %v74, %v1897
  %v1962 = vadd.f32 %v75, %v1898
  %v1963 = vadd.f32 %v76, %v1899
  %v1964 = vadd.f32 %v77, %v1900
  %v1965 = vadd.f32 %v78, %v1901
  %vm1966 = vcmask 130048
  %1967 = vst.msk [vmem:[%s3] sm:$0xff] %vm1966, %v1902
  %1968 = vst.msk [vmem:[%s3 + $0x8] sm:$0xff] %vm1966, %v1903
  %1969 = vst.msk [vmem:[%s3 + $0x10] sm:$0xff] %vm1966, %v1904
  %1970 = vst.msk [vmem:[%s3 + $0x18] sm:$0xff] %vm1966, %v1905
  %1971 = vst.msk [vmem:[%s3 + $0x20] sm:$0xff] %vm1966, %v1906
  %1972 = vst.msk [vmem:[%s3 + $0x28] sm:$0xff] %vm1966, %v1907
  %1973 = vst.msk [vmem:[%s3 + $0x30] sm:$0xff] %vm1966, %v1908
  %1974 = vst.msk [vmem:[%s3 + $0x38] sm:$0xff] %vm1966, %v1909
  %1975 = vst.msk [vmem:[%s3 + $0x40] sm:$0xff] %vm1966, %v1910
  %1976 = vst.msk [vmem:[%s3 + $0x48] sm:$0xff] %vm1966, %v1911
  %1977 = vst.msk [vmem:[%s3 + $0x50] sm:$0xff] %vm1966, %v1912
  %1978 = vst.msk [vmem:[%s3 + $0x58] sm:$0xff] %vm1966, %v1913
  %1979 = vst.msk [vmem:[%s3 + $0x60] sm:$0xff] %vm1966, %v1914
  %1980 = vst.msk [vmem:[%s3 + $0x68] sm:$0xff] %vm1966, %v1915
  %1981 = vst.msk [vmem:[%s3 + $0x70] sm:$0xff] %vm1966, %v1916
  %1982 = vst.msk [vmem:[%s3 + $0x78] sm:$0xff] %vm1966, %v1917
  %1983 = vst.msk [vmem:[%s3 + $0x80] sm:$0xff] %vm1966, %v1918
  %1984 = vst.msk [vmem:[%s3 + $0x88] sm:$0xff] %vm1966, %v1919
  %1985 = vst.msk [vmem:[%s3 + $0x90] sm:$0xff] %vm1966, %v1920
  %1986 = vst.msk [vmem:[%s3 + $0x98] sm:$0xff] %vm1966, %v1921
  %1987 = vst.msk [vmem:[%s3 + $0xa0] sm:$0xff] %vm1966, %v1922
  %1988 = vst.msk [vmem:[%s3 + $0xa8] sm:$0xff] %vm1966, %v1923
  %1989 = vst.msk [vmem:[%s3 + $0xb0] sm:$0xff] %vm1966, %v1924
  %1990 = vst.msk [vmem:[%s3 + $0xb8] sm:$0xff] %vm1966, %v1925
  %1991 = vst.msk [vmem:[%s3 + $0xc0] sm:$0xff] %vm1966, %v1926
  %1992 = vst.msk [vmem:[%s3 + $0xc8] sm:$0xff] %vm1966, %v1927
  %1993 = vst.msk [vmem:[%s3 + $0xd0] sm:$0xff] %vm1966, %v1928
  %1994 = vst.msk [vmem:[%s3 + $0xd8] sm:$0xff] %vm1966, %v1929
  %1995 = vst.msk [vmem:[%s3 + $0xe0] sm:$0xff] %vm1966, %v1930
  %1996 = vst.msk [vmem:[%s3 + $0xe8] sm:$0xff] %vm1966, %v1931
  %1997 = vst.msk [vmem:[%s3 + $0xf0] sm:$0xff] %vm1966, %v1932
  %1998 = vst.msk [vmem:[%s3 + $0xf8] sm:$0xff] %vm1966, %v1933
  %1999 = vst.msk [vmem:[%s3 + $0x100] sm:$0xff] %vm1966, %v1934
  %2000 = vst.msk [vmem:[%s3 + $0x108] sm:$0xff] %vm1966, %v1935
  %2001 = vst.msk [vmem:[%s3 + $0x110] sm:$0xff] %vm1966, %v1936
  %2002 = vst.msk [vmem:[%s3 + $0x118] sm:$0xff] %vm1966, %v1937
  %2003 = vst.msk [vmem:[%s3 + $0x120] sm:$0xff] %vm1966, %v1938
  %2004 = vst.msk [vmem:[%s3 + $0x128] sm:$0xff] %vm1966, %v1939
  %2005 = vst.msk [vmem:[%s3 + $0x130] sm:$0xff] %vm1966, %v1940
  %2006 = vst.msk [vmem:[%s3 + $0x138] sm:$0xff] %vm1966, %v1941
  %2007 = vst.msk [vmem:[%s3 + $0x140] sm:$0xff] %vm1966, %v1942
  %2008 = vst.msk [vmem:[%s3 + $0x148] sm:$0xff] %vm1966, %v1943
  %2009 = vst.msk [vmem:[%s3 + $0x150] sm:$0xff] %vm1966, %v1944
  %2010 = vst.msk [vmem:[%s3 + $0x158] sm:$0xff] %vm1966, %v1945
  %2011 = vst.msk [vmem:[%s3 + $0x160] sm:$0xff] %vm1966, %v1946
  %2012 = vst.msk [vmem:[%s3 + $0x168] sm:$0xff] %vm1966, %v1947
  %2013 = vst.msk [vmem:[%s3 + $0x170] sm:$0xff] %vm1966, %v1948
  %2014 = vst.msk [vmem:[%s3 + $0x178] sm:$0xff] %vm1966, %v1949
  %2015 = vst.msk [vmem:[%s3 + $0x180] sm:$0xff] %vm1966, %v1950
  %2016 = vst.msk [vmem:[%s3 + $0x188] sm:$0xff] %vm1966, %v1951
  %2017 = vst.msk [vmem:[%s3 + $0x190] sm:$0xff] %vm1966, %v1952
  %2018 = vst.msk [vmem:[%s3 + $0x198] sm:$0xff] %vm1966, %v1953
  %2019 = vst.msk [vmem:[%s3 + $0x1a0] sm:$0xff] %vm1966, %v1954
  %2020 = vst.msk [vmem:[%s3 + $0x1a8] sm:$0xff] %vm1966, %v1955
  %2021 = vst.msk [vmem:[%s3 + $0x1b0] sm:$0xff] %vm1966, %v1956
  %2022 = vst.msk [vmem:[%s3 + $0x1b8] sm:$0xff] %vm1966, %v1957
  %2023 = vst.msk [vmem:[%s3 + $0x1c0] sm:$0xff] %vm1966, %v1958
  %2024 = vst.msk [vmem:[%s3 + $0x1c8] sm:$0xff] %vm1966, %v1959
  %2025 = vst.msk [vmem:[%s3 + $0x1d0] sm:$0xff] %vm1966, %v1960
  %2026 = vst.msk [vmem:[%s3 + $0x1d8] sm:$0xff] %vm1966, %v1961
  %2027 = vst.msk [vmem:[%s3 + $0x1e0] sm:$0xff] %vm1966, %v1962
  %2028 = vst.msk [vmem:[%s3 + $0x1e8] sm:$0xff] %vm1966, %v1963
  %2029 = vst.msk [vmem:[%s3 + $0x1f0] sm:$0xff] %vm1966, %v1964
  %2030 = vst.msk [vmem:[%s3 + $0x1f8] sm:$0xff] %vm1966, %v1965
  // Predicated region
  $region14: #{tpu_custom_call.1} parent=0 // pred_check
    _
  $region15: #{tpu_custom_call.1} parent=0 // pred_check_branch
    %2032 = sbr.rel (0) target = $region17
  $region16: #{tpu_custom_call.1} parent=0 // pred_region
    _
  $region17: #{tpu_custom_call.1} parent=0 // pred_fallthru
    _
  // Predicated region
  $region18: #{tpu_custom_call.1} parent=0 // pred_check
    _
  $region19: #{tpu_custom_call.1} parent=0 // pred_check_branch
    %2034 = sbr.rel (0) target = $region21
  $region20: #{tpu_custom_call.1} parent=0 // pred_region
    _
  $region21: #{tpu_custom_call.1} parent=0 // pred_fallthru
    _

</llo_original>
